<compile_context>
chip_gen: v7x
topology: tpu7x:2x2x1
jax: 0.10.0
libtpu: 0.0.40
codegen_flags: <defaults>
</compile_context>

<pallas_src>
import functools

import jax
import jax.numpy as jnp
from jax import lax
from jax.experimental import pallas as pl
from jax.experimental.pallas import tpu as pltpu


LANES = 128
PAUG_ROWS = 16                 # bf16-sublane-aligned MXU operand rows
_POINT_SENTINEL = 1.0e9        # padded label points land here (never closest)
_BIG = 3.0e37                  # "+inf" for the online-min carry
_N_SUMS = 7                    # number of accumulated partial sums


def _cdiv(a, b):
    return -(-a // b)


def _round_up(a, m):
    return _cdiv(a, m) * m


def _device_kind():
    try:
        return jax.devices()[0].device_kind.lower()
    except Exception:
        return ""


def _num_parallel_cores(kind):
    # 2-way "parallel" leading grid axis only where there are 2 TensorCores
    # (v4/v5p megacore, v7x); on v5e/v6e it would just be a serial loop.
    if "lite" in kind:
        return 1
    if any(t in kind for t in ("v4", "v5p", "v7", "7x")):
        return 2
    return 1


def _vmem_capacity_bytes(kind):
    cap = None
    try:
        cap = getattr(pltpu.get_tpu_info(), "vmem_capacity_bytes", None)
    except Exception:
        cap = None
    if not cap:
        cap = 64 * 1024 * 1024 if ("v7" in kind or "7x" in kind) else 128 * 1024 * 1024
    cap = int(cap)
    if "v7" in kind or "7x" in kind:
        cap = min(cap, 64 * 1024 * 1024)   # per-TensorCore budget on v7x
    return cap


# --------------------------------------------------------------------------
# Fused segmentation + PPN loss kernel
# --------------------------------------------------------------------------
def _fused_loss_kernel(rows_ref, pts_ref, phi_ref, plo_ref, out_ref,
                       dmin_s, stat_s, acc_s, *, c, d, r2):
    ri = pl.program_id(1)
    mi = pl.program_id(2)
    nr = pl.num_programs(1)
    nm = pl.num_programs(2)

    @pl.when(jnp.logical_and(ri == 0, mi == 0))
    def _():
        acc_s[...] = jnp.zeros_like(acc_s)

    @pl.when(mi == 0)
    def _():
        dmin_s[...] = jnp.full_like(dmin_s, _BIG)
        stat_s[...] = jnp.zeros_like(stat_s)

    # Per-voxel coordinates: one lane-major (1, TN) row per spatial dimension.
    x = [rows_ref[c + 2 + k:c + 3 + k, :] for k in range(d)]

    # ----- pairwise squared distances to this block of label points (VPU) ---
    p = pts_ref[...]                                          # (TM, D) f32
    d2 = None
    for k in range(d):
        diff = p[:, k:k + 1] - x[k]                           # (TM, TN)
        d2 = diff * diff if d2 is None else d2 + diff * diff
    blk_dmin = jnp.min(d2, axis=0, keepdims=True)             # (1, TN)
    closest = (d2 <= blk_dmin).astype(jnp.bfloat16)           # tie mask, exact 0/1

    # ----- [coord sums ; tie count] of closest points on the MXU ------------
    # f32 coords pre-split into two exact bf16 operands -> ~f32 accuracy.
    blk_stat = (jnp.dot(phi_ref[...], closest, preferred_element_type=jnp.float32)
                + jnp.dot(plo_ref[...], closest, preferred_element_type=jnp.float32))

    # ----- online-min carry across M blocks ----------------------------------
    old_dmin = dmin_s[...]
    old_stat = stat_s[...]
    better = blk_dmin < old_dmin
    same = blk_dmin == old_dmin
    dmin_s[...] = jnp.minimum(old_dmin, blk_dmin)
    stat_s[...] = jnp.where(better, blk_stat,
                            jnp.where(same, old_stat + blk_stat, old_stat))

    # ----- per-row losses, once per row tile (on the final M block) ---------
    @pl.when(mi == nm - 1)
    def _():
        fdim = rows_ref.shape[0]
        lab = rows_ref[c:c + 1, :]                            # (1, TN) class id (float)
        w = rows_ref[c + 1:c + 2, :]                          # (1, TN) seg weight
        valid = rows_ref[fdim - 1:fdim, :]                    # (1, TN) 1 real / 0 pad

        # segmentation: weighted stable log-softmax CE + accuracy, unrolled
        # over the small class dim -> pure full-lane VPU ops
        lg = [rows_ref[j:j + 1, :] for j in range(c)]
        mx = lg[0]
        for j in range(1, c):
            mx = jnp.maximum(mx, lg[j])
        sum_exp = jnp.zeros_like(mx)
        lt = jnp.zeros_like(mx)
        hit = jnp.zeros_like(mx)
        for j in range(c):
            z_j = lg[j] - mx
            sum_exp = sum_exp + jnp.exp(z_j)
            is_j = lab == j
            lt = jnp.where(is_j, z_j, lt)
            # argmax ties count as correct (differs from torch only on ties)
            hit = jnp.where(jnp.logical_and(is_j, lg[j] >= mx), 1.0, hit)
        seg_wce = w * (jnp.log(sum_exp) - lt)
        seg_correct = hit * valid

        # PPN: proximity-mask CE + offset regression to the closest point
        dmin = dmin_s[...]
        stat = stat_s[...]
        pos = (dmin < r2).astype(jnp.float32)
        posv = pos * valid
        cnt = stat[d:d + 1, :]                                # tie count (>= 1)
        inv = jnp.where(cnt > 1.0,
                        pl.reciprocal(jnp.maximum(cnt, 1.0), approx=True),
                        1.0)                                  # exact in the no-tie case
        reg = None
        for k in range(d):
            tgt_k = stat[k:k + 1, :] * inv - x[k]
            delta = rows_ref[c + 2 + d + k:c + 3 + d + k, :] - tgt_k
            reg = delta * delta if reg is None else reg + delta * delta

        s = (rows_ref[c + 3 + 2 * d:c + 4 + 2 * d, :]
             - rows_ref[c + 2 + 2 * d:c + 3 + 2 * d, :])      # 2-class mask logit diff
        softplus = jnp.maximum(s, 0.0) + jnp.log(1.0 + jnp.exp(-jnp.abs(s)))
        ppn_ce = (softplus - pos * s) * valid
        ppn_correct = ((s > 0.0) == (pos > 0.5)).astype(jnp.float32) * valid

        # full-lane vector accumulation (no per-step cross-lane reductions)
        sums = (seg_wce, w, seg_correct, ppn_ce, posv * reg, posv, ppn_correct)
        for qi, q in enumerate(sums):
            acc_s[qi:qi + 1, :] = acc_s[qi:qi + 1, :] + q

    # ----- final scalar reduction + output write, once per core -------------
    @pl.when(jnp.logical_and(ri == nr - 1, mi == nm - 1))
    def _():
        lane = lax.broadcasted_iota(jnp.int32, (1, LANES), 1)
        vec = jnp.zeros((1, LANES), jnp.float32)
        for qi in range(_N_SUMS):
            vec = vec + jnp.where(lane == qi, jnp.sum(acc_s[qi:qi + 1, :]), 0.0)
        out_ref[0] = vec


# --------------------------------------------------------------------------
# Wrapper: mirror of UResNetPPNLoss.forward
# --------------------------------------------------------------------------
def uresnet_ppn_loss(seg_label, ppn_label, segmentation, ppn_points,
                     weights=None, resolution=3.0):
    """seg_label: (N, 1+D+1), ppn_label: (M, 1+D+N_l), segmentation: (N, C),
    ppn_points: (N, D+2), weights: optional (N,)."""
    n, c = segmentation.shape
    d = ppn_points.shape[1] - 2
    assert 1 <= d <= PAUG_ROWS - 1
    m = ppn_label.shape[0]

    kind = _device_kind()
    ncores = _num_parallel_cores(kind)
    vmem_cap = _vmem_capacity_bytes(kind)
    temp_budget = max(4 << 20, min(24 << 20, vmem_cap // 4))
    vmem_limit = int(min(vmem_cap * 3 // 4, 96 << 20))

    # ---- label points: column form (M_pad, D) for the distance broadcast,
    #      bf16 hi/lo augmented row form (16, M_pad) for the MXU contraction --
    m_eff = max(int(m), 1)
    tm = min(512, _round_up(m_eff, LANES))
    m_pad = _round_up(m_eff, tm)
    mb = m_pad // tm
    pts_col = jnp.full((m_pad, d), _POINT_SENTINEL, jnp.float32)
    if m > 0:
        pts_col = pts_col.at[:m, :].set(ppn_label[:, 1:1 + d].astype(jnp.float32))
    paug = jnp.zeros((PAUG_ROWS, m_pad), jnp.float32)
    paug = paug.at[:d, :].set(pts_col.T)
    paug = paug.at[d, :].set(1.0)                     # tie-count row
    paug_hi = paug.astype(jnp.bfloat16)
    paug_lo = (paug - paug_hi.astype(jnp.float32)).astype(jnp.bfloat16)

    # ---- row tile: as big as the (TM, TN) f32 temps allow ------------------
    live = 6                                          # live (TM, TN)-sized temps
    tn_cap = temp_budget // (live * tm * 4)
    tn_cap = max(LANES, min(2048, (tn_cap // LANES) * LANES))
    tn = min(tn_cap, _round_up(_cdiv(n, ncores), LANES))
    r = _cdiv(n, ncores * tn)
    n_pad = ncores * r * tn

    # ---- lane-major per-voxel slab (F, N_pad): one fused transpose/concat/
    #      pad pass in XLA; padded columns get w = 0, valid = 0 --------------
    if weights is None:
        w_row = jnp.ones((1, n), jnp.float32)
    else:
        w_row = weights.reshape(1, n).astype(jnp.float32)
    rows = jnp.concatenate([
        segmentation.astype(jnp.float32).T,                  # (C, N) seg logits
        seg_label[:, -1].astype(jnp.float32)[None, :],       # (1, N) class label
        w_row,                                               # (1, N) seg weight
        seg_label[:, 1:1 + d].astype(jnp.float32).T,         # (D, N) voxel coords
        ppn_points.astype(jnp.float32).T,                    # (D+2, N) offsets + scores
        jnp.ones((1, n), jnp.float32),                       # (1, N) valid mask
    ], axis=0)
    f = rows.shape[0]                                        # C + 2D + 5
    if n_pad > n:
        rows = jnp.pad(rows, ((0, 0), (0, n_pad - n)))

    kernel = functools.partial(_fused_loss_kernel, c=c, d=d,
                               r2=float(resolution) ** 2)
    acc = pl.pallas_call(
        kernel,
        out_shape=jax.ShapeDtypeStruct((ncores, 1, LANES), jnp.float32),
        grid_spec=pltpu.PrefetchScalarGridSpec(
            num_scalar_prefetch=0,
            grid=(ncores, r, mb),
            in_specs=[
                pl.BlockSpec((f, tn), lambda ci, ri, mi: (0, ci * r + ri)),
                pl.BlockSpec((tm, d), lambda ci, ri, mi: (mi, 0)),
                pl.BlockSpec((PAUG_ROWS, tm), lambda ci, ri, mi: (0, mi)),
                pl.BlockSpec((PAUG_ROWS, tm), lambda ci, ri, mi: (0, mi)),
            ],
            out_specs=pl.BlockSpec((1, 1, LANES), lambda ci, ri, mi: (ci, 0, 0)),
            scratch_shapes=[
                pltpu.VMEM((1, tn), jnp.float32),           # running min distance
                pltpu.VMEM((PAUG_ROWS, tn), jnp.float32),   # closest coord sums + count
                pltpu.VMEM((8, tn), jnp.float32),           # loss / accuracy partials
            ],
        ),
        compiler_params=pltpu.CompilerParams(
            dimension_semantics=("parallel", "arbitrary", "arbitrary"),
            vmem_limit_bytes=vmem_limit,
        ),
    )(rows, pts_col, paug_hi, paug_lo)

    totals = jnp.sum(acc, axis=(0, 1))                       # (128,) over cores
    n_f = jnp.float32(n)

    seg_loss = totals[0] / jnp.maximum(totals[1], 1e-9)
    seg_acc = totals[2] / jnp.maximum(n_f, 1.0)
    mask_loss = totals[3] / jnp.maximum(n_f, 1.0)
    reg_loss = totals[4] / jnp.maximum(totals[5], 1.0)
    ppn_acc = totals[6] / jnp.maximum(n_f, 1.0)

    result_seg = {'loss': seg_loss, 'accuracy': seg_acc}
    result_ppn = {'loss': mask_loss + reg_loss, 'accuracy': ppn_acc,
                  'mask_loss': mask_loss, 'reg_loss': reg_loss}
    result = {
        'loss': result_seg['loss'] + result_ppn['loss'],
        'accuracy': (result_seg['accuracy'] + result_ppn['accuracy']) / 2,
    }
    result.update({'uresnet_' + k: v for k, v in result_seg.items()})
    result.update({'ppn_' + k: v for k, v in result_ppn.items()})
    return result


# --------------------------------------------------------------------------
# Pure-JAX reference (same math, dense) for a correctness spot-check
# --------------------------------------------------------------------------
def _reference(seg_label, ppn_label, segmentation, ppn_points, resolution=3.0):
    n, _ = segmentation.shape
    d = ppn_points.shape[1] - 2
    labels = seg_label[:, -1].astype(jnp.int32)
    logits = segmentation.astype(jnp.float32)
    z = logits - jnp.max(logits, axis=-1, keepdims=True)
    lse = jnp.log(jnp.sum(jnp.exp(z), axis=-1))
    lt = jnp.take_along_axis(z, labels[:, None], axis=1)[:, 0]
    seg_loss = jnp.mean(lse - lt)
    seg_acc = jnp.mean((jnp.argmax(logits, axis=-1) == labels).astype(jnp.float32))

    x = seg_label[:, 1:1 + d].astype(jnp.float32)
    p = ppn_label[:, 1:1 + d].astype(jnp.float32)
    d2 = jnp.sum((x[:, None, :] - p[None, :, :]) ** 2, axis=-1)
    dmin = jnp.min(d2, axis=-1)
    pos = (dmin < resolution ** 2).astype(jnp.float32)
    tgt = p[jnp.argmin(d2, axis=-1)] - x
    reg = jnp.sum((ppn_points[:, :d] - tgt) ** 2, axis=-1)
    s = ppn_points[:, d + 1] - ppn_points[:, d]
    ce2 = jnp.maximum(s, 0.0) + jnp.log(1.0 + jnp.exp(-jnp.abs(s))) - pos * s
    mask_loss = jnp.mean(ce2)
    reg_loss = jnp.sum(pos * reg) / jnp.maximum(jnp.sum(pos), 1.0)
    ppn_acc = jnp.mean(((s > 0).astype(jnp.float32) == pos).astype(jnp.float32))
    return {'loss': seg_loss + mask_loss + reg_loss,
            'accuracy': (seg_acc + ppn_acc) / 2,
            'uresnet_loss': seg_loss, 'ppn_mask_loss': mask_loss,
            'ppn_reg_loss': reg_loss}


if __name__ == "__main__":
    key = jax.random.PRNGKey(0)
    k1, k2, k3, k4, k5, k6 = jax.random.split(key, 6)

    N, C, D, M = 256, 5, 3, 32   # voxels, seg classes, spatial dims, label points

    # (N, 1 + D + 1): batch id, coords, class label
    seg_coords = jax.random.uniform(k1, (N, D), jnp.float32, 0.0, 16.0)
    seg_cls = jax.random.randint(k2, (N, 1), 0, C).astype(jnp.float32)
    seg_label = jnp.concatenate(
        [jnp.zeros((N, 1), jnp.float32), seg_coords, seg_cls], axis=1)

    # (M, 1 + D + N_l): batch id, coords, point-type labels (N_l = 2)
    ppn_coords = jax.random.uniform(k3, (M, D), jnp.float32, 0.0, 16.0)
    ppn_types = jax.random.randint(k4, (M, 2), 0, C).astype(jnp.float32)
    ppn_label = jnp.concatenate(
        [jnp.zeros((M, 1), jnp.float32), ppn_coords, ppn_types], axis=1)

    # Synthetic model outputs (deterministic)
    segmentation = jax.random.normal(k5, (N, C), jnp.float32)
    ppn_points = jax.random.normal(k6, (N, D + 2), jnp.float32)

    out = jax.jit(uresnet_ppn_loss)(seg_label, ppn_label, segmentation, ppn_points)
    out = jax.block_until_ready(out)

    ref = _reference(seg_label, ppn_label, segmentation, ppn_points)
    assert jnp.isfinite(out['loss']) and jnp.isfinite(out['accuracy'])
    assert jnp.allclose(out['loss'], ref['loss'], rtol=1e-3, atol=1e-4), \
        (out['loss'], ref['loss'])
    assert jnp.allclose(out['accuracy'], ref['accuracy'], rtol=1e-3, atol=1e-4), \
        (out['accuracy'], ref['accuracy'])
    assert jnp.allclose(out['uresnet_loss'], ref['uresnet_loss'], rtol=1e-3, atol=1e-4)
    assert jnp.allclose(out['ppn_mask_loss'], ref['ppn_mask_loss'], rtol=1e-3, atol=1e-4)
    assert jnp.allclose(out['ppn_reg_loss'], ref['ppn_reg_loss'], rtol=1e-3, atol=1e-4)
    print("KERNEL_OK")
</pallas_src>

<mosaic_0001>
module attributes {stable_mosaic.version = 11 : i64} {
  func.func @_fused_loss_kernel(%arg0: i32, %arg1: i32, %arg2: i32, %arg3: memref<16x256xf32, #tpu.memory_space<vmem>>, %arg4: memref<128x3xf32, #tpu.memory_space<vmem>>, %arg5: memref<16x128xbf16, #tpu.memory_space<vmem>>, %arg6: memref<16x128xbf16, #tpu.memory_space<vmem>>, %arg7: memref<1x1x128xf32, #tpu.memory_space<vmem>>, %arg8: memref<1x256xf32, #tpu.memory_space<vmem>>, %arg9: memref<16x256xf32, #tpu.memory_space<vmem>>, %arg10: memref<8x256xf32, #tpu.memory_space<vmem>>) attributes {dimension_semantics = [#tpu.dimension_semantics<parallel>, #tpu.dimension_semantics<arbitrary>, #tpu.dimension_semantics<arbitrary>], iteration_bounds = array<i64: 1, 1, 1>, scalar_prefetch = 0 : i64, scratch_operands = 3 : i64, tpu.core_type = #tpu.core_type<tc>, window_params = [{transform_indices = @transform_0, window_bounds = array<i64: 16, 256>}, {transform_indices = @transform_1, window_bounds = array<i64: 128, 3>}, {transform_indices = @transform_2, window_bounds = array<i64: 16, 128>}, {transform_indices = @transform_3, window_bounds = array<i64: 16, 128>}, {transform_indices = @transform_4, window_bounds = array<i64: 1, 1, 128>}]} {
    %c0_i32 = arith.constant 0 : i32
    %0 = arith.cmpi eq, %arg1, %c0_i32 : i32
    %c0_i32_0 = arith.constant 0 : i32
    %1 = arith.cmpi eq, %arg2, %c0_i32_0 : i32
    %2 = arith.andi %0, %1 : i1
    %3 = arith.extui %2 : i1 to i32
    %c0_i32_1 = arith.constant 0 : i32
    %4 = arith.cmpi ne, %3, %c0_i32_1 : i32
    scf.if %4 {
      %cst_27 = arith.constant 0.000000e+00 : f32
      %63 = vector.broadcast %cst_27 : f32 to vector<8x256xf32>
      %c0_28 = arith.constant 0 : index
      %c0_29 = arith.constant 0 : index
      %64 = vector.load %arg10[%c0_28, %c0_29] : memref<8x256xf32, #tpu.memory_space<vmem>>, vector<8x256xf32>
      tpu.vector_store %arg10[%c0_28, %c0_29], %63 {strides = array<i32>} : memref<8x256xf32, #tpu.memory_space<vmem>>, vector<8x256xf32>,
    } else {
    }
    %c0_i32_2 = arith.constant 0 : i32
    %5 = arith.cmpi eq, %arg2, %c0_i32_2 : i32
    %6 = arith.extui %5 : i1 to i32
    %c0_i32_3 = arith.constant 0 : i32
    %7 = arith.cmpi ne, %6, %c0_i32_3 : i32
    scf.if %7 {
      %cst_27 = arith.constant 3.000000e+37 : f32
      %63 = vector.broadcast %cst_27 : f32 to vector<1x256xf32>
      %c0_28 = arith.constant 0 : index
      %c0_29 = arith.constant 0 : index
      %64 = vector.load %arg8[%c0_28, %c0_29] : memref<1x256xf32, #tpu.memory_space<vmem>>, vector<1x256xf32>
      tpu.vector_store %arg8[%c0_28, %c0_29], %63 {strides = array<i32>} : memref<1x256xf32, #tpu.memory_space<vmem>>, vector<1x256xf32>,
      %cst_30 = arith.constant 0.000000e+00 : f32
      %65 = vector.broadcast %cst_30 : f32 to vector<16x256xf32>
      %c0_31 = arith.constant 0 : index
      %c0_32 = arith.constant 0 : index
      %66 = vector.load %arg9[%c0_31, %c0_32] : memref<16x256xf32, #tpu.memory_space<vmem>>, vector<16x256xf32>
      tpu.vector_store %arg9[%c0_31, %c0_32], %65 {strides = array<i32>} : memref<16x256xf32, #tpu.memory_space<vmem>>, vector<16x256xf32>,
    } else {
    }
    %c7 = arith.constant 7 : index
    %c0 = arith.constant 0 : index
    %8 = vector.load %arg3[%c7, %c0] : memref<16x256xf32, #tpu.memory_space<vmem>>, vector<1x256xf32>
    %c8 = arith.constant 8 : index
    %c0_4 = arith.constant 0 : index
    %9 = vector.load %arg3[%c8, %c0_4] : memref<16x256xf32, #tpu.memory_space<vmem>>, vector<1x256xf32>
    %c9 = arith.constant 9 : index
    %c0_5 = arith.constant 0 : index
    %10 = vector.load %arg3[%c9, %c0_5] : memref<16x256xf32, #tpu.memory_space<vmem>>, vector<1x256xf32>
    %c0_6 = arith.constant 0 : index
    %c0_7 = arith.constant 0 : index
    %11 = vector.load %arg4[%c0_6, %c0_7] : memref<128x3xf32, #tpu.memory_space<vmem>>, vector<128x3xf32>
    %12 = vector.extract_strided_slice %11 {offsets = [0, 0], sizes = [128, 1], strides = [1, 1]} : vector<128x3xf32> to vector<128x1xf32>
    %13 = vector.broadcast %12 : vector<128x1xf32> to vector<128x256xf32>
    %14 = vector.broadcast %8 : vector<1x256xf32> to vector<128x256xf32>
    %15 = arith.subf %13, %14 : vector<128x256xf32>
    %16 = arith.mulf %15, %15 : vector<128x256xf32>
    %17 = vector.extract_strided_slice %11 {offsets = [0, 1], sizes = [128, 1], strides = [1, 1]} : vector<128x3xf32> to vector<128x1xf32>
    %18 = vector.broadcast %17 : vector<128x1xf32> to vector<128x256xf32>
    %19 = vector.broadcast %9 : vector<1x256xf32> to vector<128x256xf32>
    %20 = arith.subf %18, %19 : vector<128x256xf32>
    %21 = arith.mulf %20, %20 : vector<128x256xf32>
    %22 = arith.addf %16, %21 : vector<128x256xf32>
    %23 = vector.extract_strided_slice %11 {offsets = [0, 2], sizes = [128, 1], strides = [1, 1]} : vector<128x3xf32> to vector<128x1xf32>
    %24 = vector.broadcast %23 : vector<128x1xf32> to vector<128x256xf32>
    %25 = vector.broadcast %10 : vector<1x256xf32> to vector<128x256xf32>
    %26 = arith.subf %24, %25 : vector<128x256xf32>
    %27 = arith.mulf %26, %26 : vector<128x256xf32>
    %28 = arith.addf %22, %27 : vector<128x256xf32>
    %cst = arith.constant dense<0x7F800000> : vector<256xf32>
    %29 = vector.multi_reduction <minimumf>, %28, %cst [0] : vector<128x256xf32> to vector<256xf32>
    %30 = vector.shape_cast %29 : vector<256xf32> to vector<1x256xf32>
    %31 = vector.broadcast %30 : vector<1x256xf32> to vector<128x256xf32>
    %32 = arith.cmpf ole, %28, %31 : vector<128x256xf32>
    %33 = arith.extui %32 : vector<128x256xi1> to vector<128x256xi32>
    %34 = arith.sitofp %33 : vector<128x256xi32> to vector<128x256xf32>
    %35 = arith.truncf %34 : vector<128x256xf32> to vector<128x256xbf16>
    %c0_8 = arith.constant 0 : index
    %c0_9 = arith.constant 0 : index
    %36 = vector.load %arg5[%c0_8, %c0_9] : memref<16x128xbf16, #tpu.memory_space<vmem>>, vector<16x128xbf16>
    %cst_10 = arith.constant dense<0.000000e+00> : vector<16x256xf32>
    %37 = tpu.matmul %36, %35, %cst_10 {dimension_numbers = #tpu.dot_dimension_numbers<[1], [0], [0], [1], [0, 0, 1, 1], [], []>} : vector<16x128xbf16>, vector<128x256xbf16>, vector<16x256xf32> -> vector<16x256xf32>
    %c0_11 = arith.constant 0 : index
    %c0_12 = arith.constant 0 : index
    %38 = vector.load %arg6[%c0_11, %c0_12] : memref<16x128xbf16, #tpu.memory_space<vmem>>, vector<16x128xbf16>
    %cst_13 = arith.constant dense<0.000000e+00> : vector<16x256xf32>
    %39 = tpu.matmul %38, %35, %cst_13 {dimension_numbers = #tpu.dot_dimension_numbers<[1], [0], [0], [1], [0, 0, 1, 1], [], []>} : vector<16x128xbf16>, vector<128x256xbf16>, vector<16x256xf32> -> vector<16x256xf32>
    %40 = arith.addf %37, %39 : vector<16x256xf32>
    %c0_14 = arith.constant 0 : index
    %c0_15 = arith.constant 0 : index
    %41 = vector.load %arg8[%c0_14, %c0_15] : memref<1x256xf32, #tpu.memory_space<vmem>>, vector<1x256xf32>
    %c0_16 = arith.constant 0 : index
    %c0_17 = arith.constant 0 : index
    %42 = vector.load %arg9[%c0_16, %c0_17] : memref<16x256xf32, #tpu.memory_space<vmem>>, vector<16x256xf32>
    %43 = arith.cmpf olt, %30, %41 : vector<1x256xf32>
    %44 = arith.cmpf oeq, %30, %41 : vector<1x256xf32>
    %45 = arith.minimumf %41, %30 : vector<1x256xf32>
    %c0_18 = arith.constant 0 : index
    %c0_19 = arith.constant 0 : index
    %46 = vector.load %arg8[%c0_18, %c0_19] : memref<1x256xf32, #tpu.memory_space<vmem>>, vector<1x256xf32>
    tpu.vector_store %arg8[%c0_18, %c0_19], %45 {strides = array<i32>} : memref<1x256xf32, #tpu.memory_space<vmem>>, vector<1x256xf32>,
    %47 = arith.addf %42, %40 : vector<16x256xf32>
    %48 = vector.shape_cast %44 : vector<1x256xi1> to vector<1x256xi1>
    %49 = vector.broadcast %48 : vector<1x256xi1> to vector<16x256xi1>
    %50 = arith.select %49, %47, %42 : vector<16x256xi1>, vector<16x256xf32>
    %51 = vector.shape_cast %43 : vector<1x256xi1> to vector<1x256xi1>
    %52 = vector.broadcast %51 : vector<1x256xi1> to vector<16x256xi1>
    %53 = arith.select %52, %40, %50 : vector<16x256xi1>, vector<16x256xf32>
    %c0_20 = arith.constant 0 : index
    %c0_21 = arith.constant 0 : index
    %54 = vector.load %arg9[%c0_20, %c0_21] : memref<16x256xf32, #tpu.memory_space<vmem>>, vector<16x256xf32>
    tpu.vector_store %arg9[%c0_20, %c0_21], %53 {strides = array<i32>} : memref<16x256xf32, #tpu.memory_space<vmem>>, vector<16x256xf32>,
    %c0_i32_22 = arith.constant 0 : i32
    %55 = arith.cmpi eq, %arg2, %c0_i32_22 : i32
    %56 = arith.extui %55 : i1 to i32
    %c0_i32_23 = arith.constant 0 : i32
    %57 = arith.cmpi ne, %56, %c0_i32_23 : i32
    scf.if %57 {
      %c5 = arith.constant 5 : index
      %c0_27 = arith.constant 0 : index
      %63 = vector.load %arg3[%c5, %c0_27] : memref<16x256xf32, #tpu.memory_space<vmem>>, vector<1x256xf32>
      %c6 = arith.constant 6 : index
      %c0_28 = arith.constant 0 : index
      %64 = vector.load %arg3[%c6, %c0_28] : memref<16x256xf32, #tpu.memory_space<vmem>>, vector<1x256xf32>
      %c15 = arith.constant 15 : index
      %c0_29 = arith.constant 0 : index
      %65 = vector.load %arg3[%c15, %c0_29] : memref<16x256xf32, #tpu.memory_space<vmem>>, vector<1x256xf32>
      %c0_30 = arith.constant 0 : index
      %c0_31 = arith.constant 0 : index
      %66 = vector.load %arg3[%c0_30, %c0_31] : memref<16x256xf32, #tpu.memory_space<vmem>>, vector<1x256xf32>
      %c1 = arith.constant 1 : index
      %c0_32 = arith.constant 0 : index
      %67 = vector.load %arg3[%c1, %c0_32] : memref<16x256xf32, #tpu.memory_space<vmem>>, vector<1x256xf32>
      %c2 = arith.constant 2 : index
      %c0_33 = arith.constant 0 : index
      %68 = vector.load %arg3[%c2, %c0_33] : memref<16x256xf32, #tpu.memory_space<vmem>>, vector<1x256xf32>
      %c3 = arith.constant 3 : index
      %c0_34 = arith.constant 0 : index
      %69 = vector.load %arg3[%c3, %c0_34] : memref<16x256xf32, #tpu.memory_space<vmem>>, vector<1x256xf32>
      %c4 = arith.constant 4 : index
      %c0_35 = arith.constant 0 : index
      %70 = vector.load %arg3[%c4, %c0_35] : memref<16x256xf32, #tpu.memory_space<vmem>>, vector<1x256xf32>
      %71 = arith.maximumf %66, %67 : vector<1x256xf32>
      %72 = arith.maximumf %71, %68 : vector<1x256xf32>
      %73 = arith.maximumf %72, %69 : vector<1x256xf32>
      %74 = arith.maximumf %73, %70 : vector<1x256xf32>
      %cst_36 = arith.constant 0.000000e+00 : f32
      %75 = vector.broadcast %cst_36 : f32 to vector<1x256xf32>
      %cst_37 = arith.constant 0.000000e+00 : f32
      %76 = vector.broadcast %cst_37 : f32 to vector<1x256xf32>
      %cst_38 = arith.constant 0.000000e+00 : f32
      %77 = vector.broadcast %cst_38 : f32 to vector<1x256xf32>
      %78 = arith.subf %66, %74 : vector<1x256xf32>
      %79 = math.exp %78 : vector<1x256xf32>
      %80 = arith.addf %75, %79 : vector<1x256xf32>
      %cst_39 = arith.constant 0.000000e+00 : f32
      %81 = vector.broadcast %cst_39 : f32 to vector<1x256xf32>
      %82 = arith.cmpf oeq, %63, %81 : vector<1x256xf32>
      %83 = arith.select %82, %78, %76 : vector<1x256xi1>, vector<1x256xf32>
      %84 = arith.cmpf oge, %66, %74 : vector<1x256xf32>
      %85 = arith.andi %82, %84 : vector<1x256xi1>
      %cst_40 = arith.constant 1.000000e+00 : f32
      %86 = vector.broadcast %cst_40 : f32 to vector<1x256xf32>
      %87 = arith.select %85, %86, %77 : vector<1x256xi1>, vector<1x256xf32>
      %88 = arith.subf %67, %74 : vector<1x256xf32>
      %89 = math.exp %88 : vector<1x256xf32>
      %90 = arith.addf %80, %89 : vector<1x256xf32>
      %cst_41 = arith.constant 1.000000e+00 : f32
      %91 = vector.broadcast %cst_41 : f32 to vector<1x256xf32>
      %92 = arith.cmpf oeq, %63, %91 : vector<1x256xf32>
      %93 = arith.select %92, %88, %83 : vector<1x256xi1>, vector<1x256xf32>
      %94 = arith.cmpf oge, %67, %74 : vector<1x256xf32>
      %95 = arith.andi %92, %94 : vector<1x256xi1>
      %cst_42 = arith.constant 1.000000e+00 : f32
      %96 = vector.broadcast %cst_42 : f32 to vector<1x256xf32>
      %97 = arith.select %95, %96, %87 : vector<1x256xi1>, vector<1x256xf32>
      %98 = arith.subf %68, %74 : vector<1x256xf32>
      %99 = math.exp %98 : vector<1x256xf32>
      %100 = arith.addf %90, %99 : vector<1x256xf32>
      %cst_43 = arith.constant 2.000000e+00 : f32
      %101 = vector.broadcast %cst_43 : f32 to vector<1x256xf32>
      %102 = arith.cmpf oeq, %63, %101 : vector<1x256xf32>
      %103 = arith.select %102, %98, %93 : vector<1x256xi1>, vector<1x256xf32>
      %104 = arith.cmpf oge, %68, %74 : vector<1x256xf32>
      %105 = arith.andi %102, %104 : vector<1x256xi1>
      %cst_44 = arith.constant 1.000000e+00 : f32
      %106 = vector.broadcast %cst_44 : f32 to vector<1x256xf32>
      %107 = arith.select %105, %106, %97 : vector<1x256xi1>, vector<1x256xf32>
      %108 = arith.subf %69, %74 : vector<1x256xf32>
      %109 = math.exp %108 : vector<1x256xf32>
      %110 = arith.addf %100, %109 : vector<1x256xf32>
      %cst_45 = arith.constant 3.000000e+00 : f32
      %111 = vector.broadcast %cst_45 : f32 to vector<1x256xf32>
      %112 = arith.cmpf oeq, %63, %111 : vector<1x256xf32>
      %113 = arith.select %112, %108, %103 : vector<1x256xi1>, vector<1x256xf32>
      %114 = arith.cmpf oge, %69, %74 : vector<1x256xf32>
      %115 = arith.andi %112, %114 : vector<1x256xi1>
      %cst_46 = arith.constant 1.000000e+00 : f32
      %116 = vector.broadcast %cst_46 : f32 to vector<1x256xf32>
      %117 = arith.select %115, %116, %107 : vector<1x256xi1>, vector<1x256xf32>
      %118 = arith.subf %70, %74 : vector<1x256xf32>
      %119 = math.exp %118 : vector<1x256xf32>
      %120 = arith.addf %110, %119 : vector<1x256xf32>
      %cst_47 = arith.constant 4.000000e+00 : f32
      %121 = vector.broadcast %cst_47 : f32 to vector<1x256xf32>
      %122 = arith.cmpf oeq, %63, %121 : vector<1x256xf32>
      %123 = arith.select %122, %118, %113 : vector<1x256xi1>, vector<1x256xf32>
      %124 = arith.cmpf oge, %70, %74 : vector<1x256xf32>
      %125 = arith.andi %122, %124 : vector<1x256xi1>
      %cst_48 = arith.constant 1.000000e+00 : f32
      %126 = vector.broadcast %cst_48 : f32 to vector<1x256xf32>
      %127 = arith.select %125, %126, %117 : vector<1x256xi1>, vector<1x256xf32>
      %128 = math.log %120 : vector<1x256xf32>
      %129 = arith.subf %128, %123 : vector<1x256xf32>
      %130 = arith.mulf %64, %129 : vector<1x256xf32>
      %131 = arith.mulf %127, %65 : vector<1x256xf32>
      %c0_49 = arith.constant 0 : index
      %c0_50 = arith.constant 0 : index
      %132 = vector.load %arg8[%c0_49, %c0_50] : memref<1x256xf32, #tpu.memory_space<vmem>>, vector<1x256xf32>
      %c0_51 = arith.constant 0 : index
      %c0_52 = arith.constant 0 : index
      %133 = vector.load %arg9[%c0_51, %c0_52] : memref<16x256xf32, #tpu.memory_space<vmem>>, vector<16x256xf32>
      %cst_53 = arith.constant 9.000000e+00 : f32
      %134 = vector.broadcast %cst_53 : f32 to vector<1x256xf32>
      %135 = arith.cmpf olt, %132, %134 : vector<1x256xf32>
      %136 = arith.extui %135 : vector<1x256xi1> to vector<1x256xi32>
      %137 = arith.sitofp %136 : vector<1x256xi32> to vector<1x256xf32>
      %138 = arith.mulf %137, %65 : vector<1x256xf32>
      %139 = vector.extract_strided_slice %133 {offsets = [3, 0], sizes = [1, 256], strides = [1, 1]} : vector<16x256xf32> to vector<1x256xf32>
      %cst_54 = arith.constant 1.000000e+00 : f32
      %140 = vector.broadcast %cst_54 : f32 to vector<1x256xf32>
      %141 = arith.cmpf ogt, %139, %140 : vector<1x256xf32>
      %cst_55 = arith.constant 1.000000e+00 : f32
      %142 = vector.broadcast %cst_55 : f32 to vector<1x256xf32>
      %143 = arith.maximumf %139, %142 : vector<1x256xf32>
      %144 = tpu.reciprocal %143 {approx = true} : vector<1x256xf32> -> vector<1x256xf32>
      %cst_56 = arith.constant 1.000000e+00 : f32
      %145 = vector.broadcast %cst_56 : f32 to vector<1x256xf32>
      %146 = arith.select %141, %144, %145 : vector<1x256xi1>, vector<1x256xf32>
      %147 = vector.extract_strided_slice %133 {offsets = [0, 0], sizes = [1, 256], strides = [1, 1]} : vector<16x256xf32> to vector<1x256xf32>
      %148 = arith.mulf %147, %146 : vector<1x256xf32>
      %149 = arith.subf %148, %8 : vector<1x256xf32>
      %c10 = arith.constant 10 : index
      %c0_57 = arith.constant 0 : index
      %150 = vector.load %arg3[%c10, %c0_57] : memref<16x256xf32, #tpu.memory_space<vmem>>, vector<1x256xf32>
      %151 = arith.subf %150, %149 : vector<1x256xf32>
      %152 = arith.mulf %151, %151 : vector<1x256xf32>
      %153 = vector.extract_strided_slice %133 {offsets = [1, 0], sizes = [1, 256], strides = [1, 1]} : vector<16x256xf32> to vector<1x256xf32>
      %154 = arith.mulf %153, %146 : vector<1x256xf32>
      %155 = arith.subf %154, %9 : vector<1x256xf32>
      %c11 = arith.constant 11 : index
      %c0_58 = arith.constant 0 : index
      %156 = vector.load %arg3[%c11, %c0_58] : memref<16x256xf32, #tpu.memory_space<vmem>>, vector<1x256xf32>
      %157 = arith.subf %156, %155 : vector<1x256xf32>
      %158 = arith.mulf %157, %157 : vector<1x256xf32>
      %159 = arith.addf %152, %158 : vector<1x256xf32>
      %160 = vector.extract_strided_slice %133 {offsets = [2, 0], sizes = [1, 256], strides = [1, 1]} : vector<16x256xf32> to vector<1x256xf32>
      %161 = arith.mulf %160, %146 : vector<1x256xf32>
      %162 = arith.subf %161, %10 : vector<1x256xf32>
      %c12 = arith.constant 12 : index
      %c0_59 = arith.constant 0 : index
      %163 = vector.load %arg3[%c12, %c0_59] : memref<16x256xf32, #tpu.memory_space<vmem>>, vector<1x256xf32>
      %164 = arith.subf %163, %162 : vector<1x256xf32>
      %165 = arith.mulf %164, %164 : vector<1x256xf32>
      %166 = arith.addf %159, %165 : vector<1x256xf32>
      %c14 = arith.constant 14 : index
      %c0_60 = arith.constant 0 : index
      %167 = vector.load %arg3[%c14, %c0_60] : memref<16x256xf32, #tpu.memory_space<vmem>>, vector<1x256xf32>
      %c13 = arith.constant 13 : index
      %c0_61 = arith.constant 0 : index
      %168 = vector.load %arg3[%c13, %c0_61] : memref<16x256xf32, #tpu.memory_space<vmem>>, vector<1x256xf32>
      %169 = arith.subf %167, %168 : vector<1x256xf32>
      %cst_62 = arith.constant 0.000000e+00 : f32
      %170 = vector.broadcast %cst_62 : f32 to vector<1x256xf32>
      %171 = arith.maximumf %169, %170 : vector<1x256xf32>
      %172 = math.absf %169 : vector<1x256xf32>
      %cst_63 = arith.constant 0.000000e+00 : f32
      %173 = vector.broadcast %cst_63 : f32 to vector<1x256xf32>
      %174 = arith.subf %173, %172 : vector<1x256xf32>
      %175 = math.exp %174 : vector<1x256xf32>
      %cst_64 = arith.constant 1.000000e+00 : f32
      %176 = vector.broadcast %cst_64 : f32 to vector<1x256xf32>
      %177 = arith.addf %176, %175 : vector<1x256xf32>
      %178 = math.log %177 : vector<1x256xf32>
      %179 = arith.addf %171, %178 : vector<1x256xf32>
      %180 = arith.mulf %137, %169 : vector<1x256xf32>
      %181 = arith.subf %179, %180 : vector<1x256xf32>
      %182 = arith.mulf %181, %65 : vector<1x256xf32>
      %cst_65 = arith.constant 0.000000e+00 : f32
      %183 = vector.broadcast %cst_65 : f32 to vector<1x256xf32>
      %184 = arith.cmpf ogt, %169, %183 : vector<1x256xf32>
      %cst_66 = arith.constant 5.000000e-01 : f32
      %185 = vector.broadcast %cst_66 : f32 to vector<1x256xf32>
      %186 = arith.cmpf ogt, %137, %185 : vector<1x256xf32>
      %187 = arith.xori %184, %186 : vector<1x256xi1>
      %cst_67 = arith.constant dense<true> : vector<1x256xi1>
      %188 = arith.xori %187, %cst_67 : vector<1x256xi1>
      %189 = arith.extui %188 : vector<1x256xi1> to vector<1x256xi32>
      %190 = arith.sitofp %189 : vector<1x256xi32> to vector<1x256xf32>
      %191 = arith.mulf %190, %65 : vector<1x256xf32>
      %192 = arith.mulf %138, %166 : vector<1x256xf32>
      %c0_68 = arith.constant 0 : index
      %c0_69 = arith.constant 0 : index
      %193 = vector.load %arg10[%c0_68, %c0_69] : memref<8x256xf32, #tpu.memory_space<vmem>>, vector<1x256xf32>
      %194 = arith.addf %193, %130 : vector<1x256xf32>
      %c0_70 = arith.constant 0 : index
      %c0_71 = arith.constant 0 : index
      %195 = vector.load %arg10[%c0_70, %c0_71] : memref<8x256xf32, #tpu.memory_space<vmem>>, vector<1x256xf32>
      tpu.vector_store %arg10[%c0_70, %c0_71], %194 {strides = array<i32>} : memref<8x256xf32, #tpu.memory_space<vmem>>, vector<1x256xf32>,
      %c1_72 = arith.constant 1 : index
      %c0_73 = arith.constant 0 : index
      %196 = vector.load %arg10[%c1_72, %c0_73] : memref<8x256xf32, #tpu.memory_space<vmem>>, vector<1x256xf32>
      %197 = arith.addf %196, %64 : vector<1x256xf32>
      %c1_74 = arith.constant 1 : index
      %c0_75 = arith.constant 0 : index
      %198 = vector.load %arg10[%c1_74, %c0_75] : memref<8x256xf32, #tpu.memory_space<vmem>>, vector<1x256xf32>
      tpu.vector_store %arg10[%c1_74, %c0_75], %197 {strides = array<i32>} : memref<8x256xf32, #tpu.memory_space<vmem>>, vector<1x256xf32>,
      %c2_76 = arith.constant 2 : index
      %c0_77 = arith.constant 0 : index
      %199 = vector.load %arg10[%c2_76, %c0_77] : memref<8x256xf32, #tpu.memory_space<vmem>>, vector<1x256xf32>
      %200 = arith.addf %199, %131 : vector<1x256xf32>
      %c2_78 = arith.constant 2 : index
      %c0_79 = arith.constant 0 : index
      %201 = vector.load %arg10[%c2_78, %c0_79] : memref<8x256xf32, #tpu.memory_space<vmem>>, vector<1x256xf32>
      tpu.vector_store %arg10[%c2_78, %c0_79], %200 {strides = array<i32>} : memref<8x256xf32, #tpu.memory_space<vmem>>, vector<1x256xf32>,
      %c3_80 = arith.constant 3 : index
      %c0_81 = arith.constant 0 : index
      %202 = vector.load %arg10[%c3_80, %c0_81] : memref<8x256xf32, #tpu.memory_space<vmem>>, vector<1x256xf32>
      %203 = arith.addf %202, %182 : vector<1x256xf32>
      %c3_82 = arith.constant 3 : index
      %c0_83 = arith.constant 0 : index
      %204 = vector.load %arg10[%c3_82, %c0_83] : memref<8x256xf32, #tpu.memory_space<vmem>>, vector<1x256xf32>
      tpu.vector_store %arg10[%c3_82, %c0_83], %203 {strides = array<i32>} : memref<8x256xf32, #tpu.memory_space<vmem>>, vector<1x256xf32>,
      %c4_84 = arith.constant 4 : index
      %c0_85 = arith.constant 0 : index
      %205 = vector.load %arg10[%c4_84, %c0_85] : memref<8x256xf32, #tpu.memory_space<vmem>>, vector<1x256xf32>
      %206 = arith.addf %205, %192 : vector<1x256xf32>
      %c4_86 = arith.constant 4 : index
      %c0_87 = arith.constant 0 : index
      %207 = vector.load %arg10[%c4_86, %c0_87] : memref<8x256xf32, #tpu.memory_space<vmem>>, vector<1x256xf32>
      tpu.vector_store %arg10[%c4_86, %c0_87], %206 {strides = array<i32>} : memref<8x256xf32, #tpu.memory_space<vmem>>, vector<1x256xf32>,
      %c5_88 = arith.constant 5 : index
      %c0_89 = arith.constant 0 : index
      %208 = vector.load %arg10[%c5_88, %c0_89] : memref<8x256xf32, #tpu.memory_space<vmem>>, vector<1x256xf32>
      %209 = arith.addf %208, %138 : vector<1x256xf32>
      %c5_90 = arith.constant 5 : index
      %c0_91 = arith.constant 0 : index
      %210 = vector.load %arg10[%c5_90, %c0_91] : memref<8x256xf32, #tpu.memory_space<vmem>>, vector<1x256xf32>
      tpu.vector_store %arg10[%c5_90, %c0_91], %209 {strides = array<i32>} : memref<8x256xf32, #tpu.memory_space<vmem>>, vector<1x256xf32>,
      %c6_92 = arith.constant 6 : index
      %c0_93 = arith.constant 0 : index
      %211 = vector.load %arg10[%c6_92, %c0_93] : memref<8x256xf32, #tpu.memory_space<vmem>>, vector<1x256xf32>
      %212 = arith.addf %211, %191 : vector<1x256xf32>
      %c6_94 = arith.constant 6 : index
      %c0_95 = arith.constant 0 : index
      %213 = vector.load %arg10[%c6_94, %c0_95] : memref<8x256xf32, #tpu.memory_space<vmem>>, vector<1x256xf32>
      tpu.vector_store %arg10[%c6_94, %c0_95], %212 {strides = array<i32>} : memref<8x256xf32, #tpu.memory_space<vmem>>, vector<1x256xf32>,
    } else {
    }
    %c0_i32_24 = arith.constant 0 : i32
    %58 = arith.cmpi eq, %arg1, %c0_i32_24 : i32
    %c0_i32_25 = arith.constant 0 : i32
    %59 = arith.cmpi eq, %arg2, %c0_i32_25 : i32
    %60 = arith.andi %58, %59 : i1
    %61 = arith.extui %60 : i1 to i32
    %c0_i32_26 = arith.constant 0 : i32
    %62 = arith.cmpi ne, %61, %c0_i32_26 : i32
    scf.if %62 {
      %63 = tpu.iota {dimensions = array<i32: 1>} : vector<1x128xi32>
      %cst_27 = arith.constant 0.000000e+00 : f32
      %64 = vector.broadcast %cst_27 : f32 to vector<1x128xf32>
      %c0_i32_28 = arith.constant 0 : i32
      %65 = vector.broadcast %c0_i32_28 : i32 to vector<1x128xi32>
      %66 = arith.cmpi eq, %63, %65 : vector<1x128xi32>
      %c0_29 = arith.constant 0 : index
      %c0_30 = arith.constant 0 : index
      %67 = vector.load %arg10[%c0_29, %c0_30] : memref<8x256xf32, #tpu.memory_space<vmem>>, vector<1x256xf32>
      %68 = vector.shape_cast %67 : vector<1x256xf32> to vector<1x1x256xf32>
      %cst_31 = arith.constant dense<0.000000e+00> : vector<1xf32>
      %69 = vector.multi_reduction <add>, %68, %cst_31 [1, 2] : vector<1x1x256xf32> to vector<1xf32>
      %70 = vector.shape_cast %69 : vector<1xf32> to vector<1x1x1xf32>
      %71 = vector.extract %70[0, 0, 0] : f32 from vector<1x1x1xf32>
      %cst_32 = arith.constant 0.000000e+00 : f32
      %72 = vector.broadcast %71 : f32 to vector<1x128xf32>
      %73 = vector.broadcast %cst_32 : f32 to vector<1x128xf32>
      %74 = arith.select %66, %72, %73 : vector<1x128xi1>, vector<1x128xf32>
      %75 = arith.addf %64, %74 : vector<1x128xf32>
      %c1_i32 = arith.constant 1 : i32
      %76 = vector.broadcast %c1_i32 : i32 to vector<1x128xi32>
      %77 = arith.cmpi eq, %63, %76 : vector<1x128xi32>
      %c1 = arith.constant 1 : index
      %c0_33 = arith.constant 0 : index
      %78 = vector.load %arg10[%c1, %c0_33] : memref<8x256xf32, #tpu.memory_space<vmem>>, vector<1x256xf32>
      %79 = vector.shape_cast %78 : vector<1x256xf32> to vector<1x1x256xf32>
      %cst_34 = arith.constant dense<0.000000e+00> : vector<1xf32>
      %80 = vector.multi_reduction <add>, %79, %cst_34 [1, 2] : vector<1x1x256xf32> to vector<1xf32>
      %81 = vector.shape_cast %80 : vector<1xf32> to vector<1x1x1xf32>
      %82 = vector.extract %81[0, 0, 0] : f32 from vector<1x1x1xf32>
      %cst_35 = arith.constant 0.000000e+00 : f32
      %83 = vector.broadcast %82 : f32 to vector<1x128xf32>
      %84 = vector.broadcast %cst_35 : f32 to vector<1x128xf32>
      %85 = arith.select %77, %83, %84 : vector<1x128xi1>, vector<1x128xf32>
      %86 = arith.addf %75, %85 : vector<1x128xf32>
      %c2_i32 = arith.constant 2 : i32
      %87 = vector.broadcast %c2_i32 : i32 to vector<1x128xi32>
      %88 = arith.cmpi eq, %63, %87 : vector<1x128xi32>
      %c2 = arith.constant 2 : index
      %c0_36 = arith.constant 0 : index
      %89 = vector.load %arg10[%c2, %c0_36] : memref<8x256xf32, #tpu.memory_space<vmem>>, vector<1x256xf32>
      %90 = vector.shape_cast %89 : vector<1x256xf32> to vector<1x1x256xf32>
      %cst_37 = arith.constant dense<0.000000e+00> : vector<1xf32>
      %91 = vector.multi_reduction <add>, %90, %cst_37 [1, 2] : vector<1x1x256xf32> to vector<1xf32>
      %92 = vector.shape_cast %91 : vector<1xf32> to vector<1x1x1xf32>
      %93 = vector.extract %92[0, 0, 0] : f32 from vector<1x1x1xf32>
      %cst_38 = arith.constant 0.000000e+00 : f32
      %94 = vector.broadcast %93 : f32 to vector<1x128xf32>
      %95 = vector.broadcast %cst_38 : f32 to vector<1x128xf32>
      %96 = arith.select %88, %94, %95 : vector<1x128xi1>, vector<1x128xf32>
      %97 = arith.addf %86, %96 : vector<1x128xf32>
      %c3_i32 = arith.constant 3 : i32
      %98 = vector.broadcast %c3_i32 : i32 to vector<1x128xi32>
      %99 = arith.cmpi eq, %63, %98 : vector<1x128xi32>
      %c3 = arith.constant 3 : index
      %c0_39 = arith.constant 0 : index
      %100 = vector.load %arg10[%c3, %c0_39] : memref<8x256xf32, #tpu.memory_space<vmem>>, vector<1x256xf32>
      %101 = vector.shape_cast %100 : vector<1x256xf32> to vector<1x1x256xf32>
      %cst_40 = arith.constant dense<0.000000e+00> : vector<1xf32>
      %102 = vector.multi_reduction <add>, %101, %cst_40 [1, 2] : vector<1x1x256xf32> to vector<1xf32>
      %103 = vector.shape_cast %102 : vector<1xf32> to vector<1x1x1xf32>
      %104 = vector.extract %103[0, 0, 0] : f32 from vector<1x1x1xf32>
      %cst_41 = arith.constant 0.000000e+00 : f32
      %105 = vector.broadcast %104 : f32 to vector<1x128xf32>
      %106 = vector.broadcast %cst_41 : f32 to vector<1x128xf32>
      %107 = arith.select %99, %105, %106 : vector<1x128xi1>, vector<1x128xf32>
      %108 = arith.addf %97, %107 : vector<1x128xf32>
      %c4_i32 = arith.constant 4 : i32
      %109 = vector.broadcast %c4_i32 : i32 to vector<1x128xi32>
      %110 = arith.cmpi eq, %63, %109 : vector<1x128xi32>
      %c4 = arith.constant 4 : index
      %c0_42 = arith.constant 0 : index
      %111 = vector.load %arg10[%c4, %c0_42] : memref<8x256xf32, #tpu.memory_space<vmem>>, vector<1x256xf32>
      %112 = vector.shape_cast %111 : vector<1x256xf32> to vector<1x1x256xf32>
      %cst_43 = arith.constant dense<0.000000e+00> : vector<1xf32>
      %113 = vector.multi_reduction <add>, %112, %cst_43 [1, 2] : vector<1x1x256xf32> to vector<1xf32>
      %114 = vector.shape_cast %113 : vector<1xf32> to vector<1x1x1xf32>
      %115 = vector.extract %114[0, 0, 0] : f32 from vector<1x1x1xf32>
      %cst_44 = arith.constant 0.000000e+00 : f32
      %116 = vector.broadcast %115 : f32 to vector<1x128xf32>
      %117 = vector.broadcast %cst_44 : f32 to vector<1x128xf32>
      %118 = arith.select %110, %116, %117 : vector<1x128xi1>, vector<1x128xf32>
      %119 = arith.addf %108, %118 : vector<1x128xf32>
      %c5_i32 = arith.constant 5 : i32
      %120 = vector.broadcast %c5_i32 : i32 to vector<1x128xi32>
      %121 = arith.cmpi eq, %63, %120 : vector<1x128xi32>
      %c5 = arith.constant 5 : index
      %c0_45 = arith.constant 0 : index
      %122 = vector.load %arg10[%c5, %c0_45] : memref<8x256xf32, #tpu.memory_space<vmem>>, vector<1x256xf32>
      %123 = vector.shape_cast %122 : vector<1x256xf32> to vector<1x1x256xf32>
      %cst_46 = arith.constant dense<0.000000e+00> : vector<1xf32>
      %124 = vector.multi_reduction <add>, %123, %cst_46 [1, 2] : vector<1x1x256xf32> to vector<1xf32>
      %125 = vector.shape_cast %124 : vector<1xf32> to vector<1x1x1xf32>
      %126 = vector.extract %125[0, 0, 0] : f32 from vector<1x1x1xf32>
      %cst_47 = arith.constant 0.000000e+00 : f32
      %127 = vector.broadcast %126 : f32 to vector<1x128xf32>
      %128 = vector.broadcast %cst_47 : f32 to vector<1x128xf32>
      %129 = arith.select %121, %127, %128 : vector<1x128xi1>, vector<1x128xf32>
      %130 = arith.addf %119, %129 : vector<1x128xf32>
      %c6_i32 = arith.constant 6 : i32
      %131 = vector.broadcast %c6_i32 : i32 to vector<1x128xi32>
      %132 = arith.cmpi eq, %63, %131 : vector<1x128xi32>
      %c6 = arith.constant 6 : index
      %c0_48 = arith.constant 0 : index
      %133 = vector.load %arg10[%c6, %c0_48] : memref<8x256xf32, #tpu.memory_space<vmem>>, vector<1x256xf32>
      %134 = vector.shape_cast %133 : vector<1x256xf32> to vector<1x1x256xf32>
      %cst_49 = arith.constant dense<0.000000e+00> : vector<1xf32>
      %135 = vector.multi_reduction <add>, %134, %cst_49 [1, 2] : vector<1x1x256xf32> to vector<1xf32>
      %136 = vector.shape_cast %135 : vector<1xf32> to vector<1x1x1xf32>
      %137 = vector.extract %136[0, 0, 0] : f32 from vector<1x1x1xf32>
      %cst_50 = arith.constant 0.000000e+00 : f32
      %138 = vector.broadcast %137 : f32 to vector<1x128xf32>
      %139 = vector.broadcast %cst_50 : f32 to vector<1x128xf32>
      %140 = arith.select %132, %138, %139 : vector<1x128xi1>, vector<1x128xf32>
      %141 = arith.addf %130, %140 : vector<1x128xf32>
      %c0_51 = arith.constant 0 : index
      %c0_52 = arith.constant 0 : index
      %c0_53 = arith.constant 0 : index
      %142 = vector.load %arg7[%c0_51, %c0_52, %c0_53] : memref<1x1x128xf32, #tpu.memory_space<vmem>>, vector<1x1x128xf32>
      %143 = vector.shape_cast %142 : vector<1x1x128xf32> to vector<1x128xf32>
      %144 = vector.shape_cast %141 : vector<1x128xf32> to vector<1x1x128xf32>
      tpu.vector_store %arg7[%c0_51, %c0_52, %c0_53], %144 {strides = array<i32>} : memref<1x1x128xf32, #tpu.memory_space<vmem>>, vector<1x1x128xf32>,
    } else {
    }
    return
  }
  func.func @transform_0(%arg0: i32, %arg1: i32, %arg2: i32) -> (i32, i32) {
    %c1_i32 = arith.constant 1 : i32
    %0 = arith.muli %arg0, %c1_i32 : i32
    %1 = arith.addi %0, %arg1 : i32
    %c0_i32 = arith.constant 0 : i32
    %c0_i32_0 = arith.constant 0 : i32
    return %c0_i32, %1 : i32, i32
  }
  func.func @transform_1(%arg0: i32, %arg1: i32, %arg2: i32) -> (i32, i32) {
    %c0_i32 = arith.constant 0 : i32
    %c0_i32_0 = arith.constant 0 : i32
    return %arg2, %c0_i32 : i32, i32
  }
  func.func @transform_2(%arg0: i32, %arg1: i32, %arg2: i32) -> (i32, i32) {
    %c0_i32 = arith.constant 0 : i32
    %c0_i32_0 = arith.constant 0 : i32
    return %c0_i32, %arg2 : i32, i32
  }
  func.func @transform_3(%arg0: i32, %arg1: i32, %arg2: i32) -> (i32, i32) {
    %c0_i32 = arith.constant 0 : i32
    %c0_i32_0 = arith.constant 0 : i32
    return %c0_i32, %arg2 : i32, i32
  }
  func.func @transform_4(%arg0: i32, %arg1: i32, %arg2: i32) -> (i32, i32, i32) {
    %c0_i32 = arith.constant 0 : i32
    %c0_i32_0 = arith.constant 0 : i32
    %c0_i32_1 = arith.constant 0 : i32
    return %arg0, %c0_i32, %c0_i32_0 : i32, i32, i32
  }
}

</mosaic_0001>

<llo_original>
// kernel: uresnet_ppn_loss.1
$region0: #{uresnet_ppn_loss.1}
  #allocation0 [shape = 'u32[]', space=smem, size = 0x4, offset = 0x4, fixed_abs, tag = 'smem constant byte address 0x4 - core index']
  #allocation1 [shape = 'u32[144,128]{1,0:T(1,128)}', space=vmem, size = 0x12000, scoped, tag = 'internal scratch']
  #allocation2 [shape = 'f32[1,256]{1,0:T(1,128)}', space=vmem, size = 0x400, scoped, tag = 'scratch operand']
  #allocation3 [shape = 'f32[16,256]{1,0:T(8,128)}', space=vmem, size = 0x4000, scoped, tag = 'scratch operand']
  #allocation4 [shape = 'f32[8,256]{1,0:T(8,128)}', space=vmem, size = 0x2000, scoped, tag = 'scratch operand']
  %s0 = inlined_call_operand.hbm [shape: f32[16,256], index: 0, kind: input, shape index: {}]
  %s1 = inlined_call_operand.hbm [shape: f32[128,3], index: 1, kind: input, shape index: {}]
  %s2 = inlined_call_operand.hbm [shape: bf16[16,128], index: 2, kind: input, shape index: {}]
  %s3 = inlined_call_operand.hbm [shape: bf16[16,128], index: 3, kind: input, shape index: {}]
  %s4 = inlined_call_operand.hbm [shape: f32[1,1,128], index: 4, kind: output, shape index: {}]
  %s5 = sld [smem:[#allocation0]]
  $region58: #{uresnet_ppn_loss.1} parent=0
    _
  %s7 = ssub.s32 1, %s5
  %s8 = scalar_select 0, %s7, %s5
  $region1: #{uresnet_ppn_loss.1} parent=0
    #allocation5 [shape = 'u8[16384]{0}', space=vmem, size = 0x4000, scoped, tag = 'input window, operand 0, single buffered']
    #allocation6 [shape = 's32[1]{0}', space=sflag, size = 0x4, scoped, tag = 'scoped memory for uresnet_ppn_loss.1']
    #allocation7 [shape = 's32[1]{0}', space=sflag, size = 0x4, scoped, tag = 'scoped memory for uresnet_ppn_loss.1']
    #allocation8 [shape = 'u8[65536]{0}', space=vmem, size = 0x10000, scoped, tag = 'input window, operand 1, single buffered']
    #allocation9 [shape = 's32[1]{0}', space=sflag, size = 0x4, scoped, tag = 'scoped memory for uresnet_ppn_loss.1']
    #allocation10 [shape = 'u8[4096]{0}', space=vmem, size = 0x1000, scoped, tag = 'input window, operand 2, single buffered']
    #allocation11 [shape = 'u8[4096]{0}', space=vmem, size = 0x1000, scoped, tag = 'input window, operand 3, single buffered']
    #allocation12 [shape = 's32[1]{0}', space=sflag, size = 0x4, scoped, tag = 'scoped memory for uresnet_ppn_loss.1']
    #allocation13 [shape = 'u8[512]{0}', space=vmem, size = 0x400, scoped, tag = 'output window, operand 0, single buffered']
    %9 = vsyncpa [#allocation6], 0
    %10 = vsyncpa [#allocation9], 0
    %11 = vsyncpa [#allocation12], 0
    %12 = vsyncpa [#allocation7], 0
    // Predicated region
    $region2: #{uresnet_ppn_loss.1} parent=1 // pred_check
      _
    $region3: #{uresnet_ppn_loss.1} parent=1 // pred_check_branch
      %14 = sbr.rel (0) target = $region5
    $region4: #{uresnet_ppn_loss.1} parent=1 // pred_region
      %s15 = sadd.s32 0, 0
      %s16 = smul.u32 2, %s15
      %s18 = ssub.s32 512, 512
      %19 = vsyncadd [#allocation6], %s18
      %s20 = smul.addr %s16, 128
      %s21 = scalar_lea.hbm %s0, %s20
      %s22 = sshll.u32 [#allocation5], 4
      %s23 = int_to_ptr.vmem [resolvable:$true] %s22
      %28 = dma.hbm_to_vmem [thread:$0]  %s21, 512, %s23, [#allocation6], 256, 256, 16
    $region5: #{uresnet_ppn_loss.1} parent=1 // pred_fallthru
      _
    // Predicated region
    $region6: #{uresnet_ppn_loss.1} parent=1 // pred_check
      _
    $region7: #{uresnet_ppn_loss.1} parent=1 // pred_check_branch
      %30 = sbr.rel (0) target = $region9
    $region8: #{uresnet_ppn_loss.1} parent=1 // pred_region
      %s32 = ssub.s32 2048, 2048
      %33 = vsyncadd [#allocation9], %s32
      %s34 = sshll.u32 [#allocation8], 4
      %s35 = int_to_ptr.vmem [resolvable:$true] %s34
      %40 = dma.hbm_to_vmem [thread:$0]  %s1, 2048, %s35, [#allocation9], 128, 128, 8
    $region9: #{uresnet_ppn_loss.1} parent=1 // pred_fallthru
      _
    // Predicated region
    $region10: #{uresnet_ppn_loss.1} parent=1 // pred_check
      _
    $region11: #{uresnet_ppn_loss.1} parent=1 // pred_check_branch
      %42 = sbr.rel (0) target = $region13
    $region12: #{uresnet_ppn_loss.1} parent=1 // pred_region
      %s44 = ssub.s32 128, 128
      %45 = vsyncadd [#allocation9], %s44
      %s46 = sshll.u32 [#allocation10], 4
      %s47 = int_to_ptr.vmem [resolvable:$true] %s46
      %52 = dma.hbm_to_vmem [thread:$0]  %s2, 128, %s47, [#allocation9], 64, 64, 4
    $region13: #{uresnet_ppn_loss.1} parent=1 // pred_fallthru
      _
    // Predicated region
    $region14: #{uresnet_ppn_loss.1} parent=1 // pred_check
      _
    $region15: #{uresnet_ppn_loss.1} parent=1 // pred_check_branch
      %54 = sbr.rel (0) target = $region17
    $region16: #{uresnet_ppn_loss.1} parent=1 // pred_region
      %s56 = ssub.s32 128, 128
      %57 = vsyncadd [#allocation12], %s56
      %s58 = sshll.u32 [#allocation11], 4
      %s59 = int_to_ptr.vmem [resolvable:$true] %s58
      %64 = dma.hbm_to_vmem [thread:$0]  %s3, 128, %s59, [#allocation12], 64, 64, 4
    $region17: #{uresnet_ppn_loss.1} parent=1 // pred_fallthru
      _
    // Predicated region
    $region18: #{uresnet_ppn_loss.1} parent=1 // pred_check
      _
    $region19: #{uresnet_ppn_loss.1} parent=1 // pred_check_branch
      %66 = sbr.rel (0) target = $region21
    $region20: #{uresnet_ppn_loss.1} parent=1 // pred_region
      %67 = dma.done [#allocation6], 512
    $region21: #{uresnet_ppn_loss.1} parent=1 // pred_fallthru
      _
    // Predicated region
    $region22: #{uresnet_ppn_loss.1} parent=1 // pred_check
      _
    $region23: #{uresnet_ppn_loss.1} parent=1 // pred_check_branch
      %69 = sbr.rel (0) target = $region25
    $region24: #{uresnet_ppn_loss.1} parent=1 // pred_region
      %70 = dma.done [#allocation9], 2048
    $region25: #{uresnet_ppn_loss.1} parent=1 // pred_fallthru
      _
    // Predicated region
    $region26: #{uresnet_ppn_loss.1} parent=1 // pred_check
      _
    $region27: #{uresnet_ppn_loss.1} parent=1 // pred_check_branch
      %72 = sbr.rel (0) target = $region29
    $region28: #{uresnet_ppn_loss.1} parent=1 // pred_region
      %73 = dma.done [#allocation9], 128
    $region29: #{uresnet_ppn_loss.1} parent=1 // pred_fallthru
      _
    // Predicated region
    $region30: #{uresnet_ppn_loss.1} parent=1 // pred_check
      _
    $region31: #{uresnet_ppn_loss.1} parent=1 // pred_check_branch
      %75 = sbr.rel (0) target = $region33
    $region32: #{uresnet_ppn_loss.1} parent=1 // pred_region
      %76 = dma.done [#allocation12], 128
    $region33: #{uresnet_ppn_loss.1} parent=1 // pred_fallthru
      _
    %s77 = sadd.s32 0, 0
    %s78 = smul.u32 2, %s77
    %p80 = scmp.eq.s32.totalorder 0, 0
    %p81 = scmp.eq.s32.totalorder 0, 0
    %p82 = pnand %p80, %p81
    %p83 = pneg %p82
    // Predicated region
    $region34: #{uresnet_ppn_loss.1} parent=1 // pred_check
      _
    $region35: #{uresnet_ppn_loss.1} parent=1 // pred_check_branch
      %85 = sbr.rel (%p82) target = $region37
    $region36: #{uresnet_ppn_loss.1} parent=1 // pred_region
      %86 = vst [vmem:[#allocation4] sm:$0xff] 0.0
      %87 = vst [vmem:[#allocation4 + $0x8] sm:$0xff] 0.0
    $region37: #{uresnet_ppn_loss.1} parent=1 // pred_fallthru
      _
    // Predicated region
    $region38: #{uresnet_ppn_loss.1} parent=1 // pred_check
      %p88 = pneg %p81
    $region39: #{uresnet_ppn_loss.1} parent=1 // pred_check_branch
      %90 = sbr.rel (%p88) target = $region41
    $region40: #{uresnet_ppn_loss.1} parent=1 // pred_region
      %v91 = vlaneseq
      %vm92 = vcmp.ge.s32.totalorder %v91, 0
      %vm93 = vcmp.lt.s32.totalorder %v91, 256
      %vm94 = vmand %vm92, %vm93
      %95 = vst.msk [vmem:[#allocation2] sm:$0x3] %vm94, 3e+37
      %96 = vst [vmem:[#allocation3] sm:$0xff] 0.0
      %97 = vst [vmem:[#allocation3 + $0x8] sm:$0xff] 0.0
      %98 = vst [vmem:[#allocation3 + $0x10] sm:$0xff] 0.0
      %99 = vst [vmem:[#allocation3 + $0x18] sm:$0xff] 0.0
    $region41: #{uresnet_ppn_loss.1} parent=1 // pred_fallthru
      _
    %s100 = scalar_lea.vmem [#allocation5], 7
    %v101 = vld [vmem:[%s100] ss:$8 sm:$0x3]
    %s102 = scalar_lea.vmem [#allocation5], 16
    %v103 = vld [vmem:[%s102] ss:$8 sm:$0x3]
    %s104 = scalar_lea.vmem [#allocation5], 17
    %v105 = vld [vmem:[%s104] ss:$8 sm:$0x3]
    %v106 = vld [vmem:[#allocation8] sm:$0xff]
    %v107 = vld [vmem:[#allocation8 + $0x8] sm:$0xff]
    %v108 = vld [vmem:[#allocation8 + $0x10] sm:$0xff]
    %v109 = vld [vmem:[#allocation8 + $0x18] sm:$0xff]
    %v110 = vld [vmem:[#allocation8 + $0x20] sm:$0xff]
    %v111 = vld [vmem:[#allocation8 + $0x28] sm:$0xff]
    %v112 = vld [vmem:[#allocation8 + $0x30] sm:$0xff]
    %v113 = vld [vmem:[#allocation8 + $0x38] sm:$0xff]
    %v114 = vld [vmem:[#allocation8 + $0x40] sm:$0xff]
    %v115 = vld [vmem:[#allocation8 + $0x48] sm:$0xff]
    %v116 = vld [vmem:[#allocation8 + $0x50] sm:$0xff]
    %v117 = vld [vmem:[#allocation8 + $0x58] sm:$0xff]
    %v118 = vld [vmem:[#allocation8 + $0x60] sm:$0xff]
    %v119 = vld [vmem:[#allocation8 + $0x68] sm:$0xff]
    %v120 = vld [vmem:[#allocation8 + $0x70] sm:$0xff]
    %v121 = vld [vmem:[#allocation8 + $0x78] sm:$0xff]
    %123 = vset.pattern.permute.xlu0 0
    %124 = vperm.xlu0 %123, %v106
    %v125 = vpop.permute.xlu0 %124
    %128 = vset.pattern.permute.xlu0 0
    %129 = vperm.xlu0 %128, %v107
    %v130 = vpop.permute.xlu0 %129
    %133 = vset.pattern.permute.xlu0 0
    %134 = vperm.xlu0 %133, %v108
    %v135 = vpop.permute.xlu0 %134
    %138 = vset.pattern.permute.xlu0 0
    %139 = vperm.xlu0 %138, %v109
    %v140 = vpop.permute.xlu0 %139
    %143 = vset.pattern.permute.xlu0 0
    %144 = vperm.xlu0 %143, %v110
    %v145 = vpop.permute.xlu0 %144
    %148 = vset.pattern.permute.xlu0 0
    %149 = vperm.xlu0 %148, %v111
    %v150 = vpop.permute.xlu0 %149
    %153 = vset.pattern.permute.xlu0 0
    %154 = vperm.xlu0 %153, %v112
    %v155 = vpop.permute.xlu0 %154
    %158 = vset.pattern.permute.xlu0 0
    %159 = vperm.xlu0 %158, %v113
    %v160 = vpop.permute.xlu0 %159
    %163 = vset.pattern.permute.xlu0 0
    %164 = vperm.xlu0 %163, %v114
    %v165 = vpop.permute.xlu0 %164
    %168 = vset.pattern.permute.xlu0 0
    %169 = vperm.xlu0 %168, %v115
    %v170 = vpop.permute.xlu0 %169
    %173 = vset.pattern.permute.xlu0 0
    %174 = vperm.xlu0 %173, %v116
    %v175 = vpop.permute.xlu0 %174
    %178 = vset.pattern.permute.xlu0 0
    %179 = vperm.xlu0 %178, %v117
    %v180 = vpop.permute.xlu0 %179
    %183 = vset.pattern.permute.xlu0 0
    %184 = vperm.xlu0 %183, %v118
    %v185 = vpop.permute.xlu0 %184
    %188 = vset.pattern.permute.xlu0 0
    %189 = vperm.xlu0 %188, %v119
    %v190 = vpop.permute.xlu0 %189
    %193 = vset.pattern.permute.xlu0 0
    %194 = vperm.xlu0 %193, %v120
    %v195 = vpop.permute.xlu0 %194
    %198 = vset.pattern.permute.xlu0 0
    %199 = vperm.xlu0 %198, %v121
    %v200 = vpop.permute.xlu0 %199
    %v203 = vlaneseq
    %v204 = vshrl.u32 %v203, 7
    %v205 = vsub.s32 0, %v204
    %v206 = vrot.slane %v101, %v205
    %v207 = vlaneseq
    %v208 = vshrl.u32 %v207, 7
    %v209 = vsub.s32 1, %v208
    %v210 = vrot.slane %v101, %v209
    %v213 = vsub.f32 %v125, %v206
    %v214 = vsub.f32 %v125, %v210
    %v215 = vsub.f32 %v130, %v206
    %v216 = vsub.f32 %v130, %v210
    %v217 = vsub.f32 %v135, %v206
    %v218 = vsub.f32 %v135, %v210
    %v219 = vsub.f32 %v140, %v206
    %v220 = vsub.f32 %v140, %v210
    %v221 = vsub.f32 %v145, %v206
    %v222 = vsub.f32 %v145, %v210
    %v223 = vsub.f32 %v150, %v206
    %v224 = vsub.f32 %v150, %v210
    %v225 = vsub.f32 %v155, %v206
    %v226 = vsub.f32 %v155, %v210
    %v227 = vsub.f32 %v160, %v206
    %v228 = vsub.f32 %v160, %v210
    %v229 = vsub.f32 %v165, %v206
    %v230 = vsub.f32 %v165, %v210
    %v231 = vsub.f32 %v170, %v206
    %v232 = vsub.f32 %v170, %v210
    %v233 = vsub.f32 %v175, %v206
    %v234 = vsub.f32 %v175, %v210
    %v235 = vsub.f32 %v180, %v206
    %v236 = vsub.f32 %v180, %v210
    %v237 = vsub.f32 %v185, %v206
    %v238 = vsub.f32 %v185, %v210
    %v239 = vsub.f32 %v190, %v206
    %v240 = vsub.f32 %v190, %v210
    %v241 = vsub.f32 %v195, %v206
    %v242 = vsub.f32 %v195, %v210
    %v243 = vsub.f32 %v200, %v206
    %v244 = vsub.f32 %v200, %v210
    %v245 = vmul.f32 %v213, %v213
    %v246 = vmul.f32 %v214, %v214
    %v247 = vmul.f32 %v215, %v215
    %v248 = vmul.f32 %v216, %v216
    %v249 = vmul.f32 %v217, %v217
    %v250 = vmul.f32 %v218, %v218
    %v251 = vmul.f32 %v219, %v219
    %v252 = vmul.f32 %v220, %v220
    %v253 = vmul.f32 %v221, %v221
    %v254 = vmul.f32 %v222, %v222
    %v255 = vmul.f32 %v223, %v223
    %v256 = vmul.f32 %v224, %v224
    %v257 = vmul.f32 %v225, %v225
    %v258 = vmul.f32 %v226, %v226
    %v259 = vmul.f32 %v227, %v227
    %v260 = vmul.f32 %v228, %v228
    %v261 = vmul.f32 %v229, %v229
    %v262 = vmul.f32 %v230, %v230
    %v263 = vmul.f32 %v231, %v231
    %v264 = vmul.f32 %v232, %v232
    %v265 = vmul.f32 %v233, %v233
    %v266 = vmul.f32 %v234, %v234
    %v267 = vmul.f32 %v235, %v235
    %v268 = vmul.f32 %v236, %v236
    %v269 = vmul.f32 %v237, %v237
    %v270 = vmul.f32 %v238, %v238
    %v271 = vmul.f32 %v239, %v239
    %v272 = vmul.f32 %v240, %v240
    %v273 = vmul.f32 %v241, %v241
    %v274 = vmul.f32 %v242, %v242
    %v275 = vmul.f32 %v243, %v243
    %v276 = vmul.f32 %v244, %v244
    %277 = vset.pattern.permute.xlu0 1
    %278 = vperm.xlu0 %277, %v106
    %v279 = vpop.permute.xlu0 %278
    %281 = vset.pattern.permute.xlu0 1
    %282 = vperm.xlu0 %281, %v107
    %v283 = vpop.permute.xlu0 %282
    %285 = vset.pattern.permute.xlu0 1
    %286 = vperm.xlu0 %285, %v108
    %v287 = vpop.permute.xlu0 %286
    %289 = vset.pattern.permute.xlu0 1
    %290 = vperm.xlu0 %289, %v109
    %v291 = vpop.permute.xlu0 %290
    %293 = vset.pattern.permute.xlu0 1
    %294 = vperm.xlu0 %293, %v110
    %v295 = vpop.permute.xlu0 %294
    %297 = vset.pattern.permute.xlu0 1
    %298 = vperm.xlu0 %297, %v111
    %v299 = vpop.permute.xlu0 %298
    %301 = vset.pattern.permute.xlu0 1
    %302 = vperm.xlu0 %301, %v112
    %v303 = vpop.permute.xlu0 %302
    %305 = vset.pattern.permute.xlu0 1
    %306 = vperm.xlu0 %305, %v113
    %v307 = vpop.permute.xlu0 %306
    %309 = vset.pattern.permute.xlu0 1
    %310 = vperm.xlu0 %309, %v114
    %v311 = vpop.permute.xlu0 %310
    %313 = vset.pattern.permute.xlu0 1
    %314 = vperm.xlu0 %313, %v115
    %v315 = vpop.permute.xlu0 %314
    %317 = vset.pattern.permute.xlu0 1
    %318 = vperm.xlu0 %317, %v116
    %v319 = vpop.permute.xlu0 %318
    %321 = vset.pattern.permute.xlu0 1
    %322 = vperm.xlu0 %321, %v117
    %v323 = vpop.permute.xlu0 %322
    %325 = vset.pattern.permute.xlu0 1
    %326 = vperm.xlu0 %325, %v118
    %v327 = vpop.permute.xlu0 %326
    %329 = vset.pattern.permute.xlu0 1
    %330 = vperm.xlu0 %329, %v119
    %v331 = vpop.permute.xlu0 %330
    %333 = vset.pattern.permute.xlu0 1
    %334 = vperm.xlu0 %333, %v120
    %v335 = vpop.permute.xlu0 %334
    %337 = vset.pattern.permute.xlu0 1
    %338 = vperm.xlu0 %337, %v121
    %v339 = vpop.permute.xlu0 %338
    %v342 = vlaneseq
    %v343 = vshrl.u32 %v342, 7
    %v344 = vsub.s32 0, %v343
    %v345 = vrot.slane %v103, %v344
    %v346 = vlaneseq
    %v347 = vshrl.u32 %v346, 7
    %v348 = vsub.s32 1, %v347
    %v349 = vrot.slane %v103, %v348
    %v352 = vsub.f32 %v279, %v345
    %v353 = vsub.f32 %v279, %v349
    %v354 = vsub.f32 %v283, %v345
    %v355 = vsub.f32 %v283, %v349
    %v356 = vsub.f32 %v287, %v345
    %v357 = vsub.f32 %v287, %v349
    %v358 = vsub.f32 %v291, %v345
    %v359 = vsub.f32 %v291, %v349
    %v360 = vsub.f32 %v295, %v345
    %v361 = vsub.f32 %v295, %v349
    %v362 = vsub.f32 %v299, %v345
    %v363 = vsub.f32 %v299, %v349
    %v364 = vsub.f32 %v303, %v345
    %v365 = vsub.f32 %v303, %v349
    %v366 = vsub.f32 %v307, %v345
    %v367 = vsub.f32 %v307, %v349
    %v368 = vsub.f32 %v311, %v345
    %v369 = vsub.f32 %v311, %v349
    %v370 = vsub.f32 %v315, %v345
    %v371 = vsub.f32 %v315, %v349
    %v372 = vsub.f32 %v319, %v345
    %v373 = vsub.f32 %v319, %v349
    %v374 = vsub.f32 %v323, %v345
    %v375 = vsub.f32 %v323, %v349
    %v376 = vsub.f32 %v327, %v345
    %v377 = vsub.f32 %v327, %v349
    %v378 = vsub.f32 %v331, %v345
    %v379 = vsub.f32 %v331, %v349
    %v380 = vsub.f32 %v335, %v345
    %v381 = vsub.f32 %v335, %v349
    %v382 = vsub.f32 %v339, %v345
    %v383 = vsub.f32 %v339, %v349
    %v384 = vmul.f32 %v352, %v352
    %v385 = vmul.f32 %v353, %v353
    %v386 = vmul.f32 %v354, %v354
    %v387 = vmul.f32 %v355, %v355
    %v388 = vmul.f32 %v356, %v356
    %v389 = vmul.f32 %v357, %v357
    %v390 = vmul.f32 %v358, %v358
    %v391 = vmul.f32 %v359, %v359
    %v392 = vmul.f32 %v360, %v360
    %v393 = vmul.f32 %v361, %v361
    %v394 = vmul.f32 %v362, %v362
    %v395 = vmul.f32 %v363, %v363
    %v396 = vmul.f32 %v364, %v364
    %v397 = vmul.f32 %v365, %v365
    %v398 = vmul.f32 %v366, %v366
    %v399 = vmul.f32 %v367, %v367
    %v400 = vmul.f32 %v368, %v368
    %v401 = vmul.f32 %v369, %v369
    %v402 = vmul.f32 %v370, %v370
    %v403 = vmul.f32 %v371, %v371
    %v404 = vmul.f32 %v372, %v372
    %v405 = vmul.f32 %v373, %v373
    %v406 = vmul.f32 %v374, %v374
    %v407 = vmul.f32 %v375, %v375
    %v408 = vmul.f32 %v376, %v376
    %v409 = vmul.f32 %v377, %v377
    %v410 = vmul.f32 %v378, %v378
    %v411 = vmul.f32 %v379, %v379
    %v412 = vmul.f32 %v380, %v380
    %v413 = vmul.f32 %v381, %v381
    %v414 = vmul.f32 %v382, %v382
    %v415 = vmul.f32 %v383, %v383
    %v416 = vadd.f32 %v245, %v384
    %v417 = vadd.f32 %v246, %v385
    %v418 = vadd.f32 %v247, %v386
    %v419 = vadd.f32 %v248, %v387
    %v420 = vadd.f32 %v249, %v388
    %v421 = vadd.f32 %v250, %v389
    %v422 = vadd.f32 %v251, %v390
    %v423 = vadd.f32 %v252, %v391
    %v424 = vadd.f32 %v253, %v392
    %v425 = vadd.f32 %v254, %v393
    %v426 = vadd.f32 %v255, %v394
    %v427 = vadd.f32 %v256, %v395
    %v428 = vadd.f32 %v257, %v396
    %v429 = vadd.f32 %v258, %v397
    %v430 = vadd.f32 %v259, %v398
    %v431 = vadd.f32 %v260, %v399
    %v432 = vadd.f32 %v261, %v400
    %v433 = vadd.f32 %v262, %v401
    %v434 = vadd.f32 %v263, %v402
    %v435 = vadd.f32 %v264, %v403
    %v436 = vadd.f32 %v265, %v404
    %v437 = vadd.f32 %v266, %v405
    %v438 = vadd.f32 %v267, %v406
    %v439 = vadd.f32 %v268, %v407
    %v440 = vadd.f32 %v269, %v408
    %v441 = vadd.f32 %v270, %v409
    %v442 = vadd.f32 %v271, %v410
    %v443 = vadd.f32 %v272, %v411
    %v444 = vadd.f32 %v273, %v412
    %v445 = vadd.f32 %v274, %v413
    %v446 = vadd.f32 %v275, %v414
    %v447 = vadd.f32 %v276, %v415
    %448 = vset.pattern.permute.xlu0 2
    %449 = vperm.xlu0 %448, %v106
    %v450 = vpop.permute.xlu0 %449
    %452 = vset.pattern.permute.xlu0 2
    %453 = vperm.xlu0 %452, %v107
    %v454 = vpop.permute.xlu0 %453
    %456 = vset.pattern.permute.xlu0 2
    %457 = vperm.xlu0 %456, %v108
    %v458 = vpop.permute.xlu0 %457
    %460 = vset.pattern.permute.xlu0 2
    %461 = vperm.xlu0 %460, %v109
    %v462 = vpop.permute.xlu0 %461
    %464 = vset.pattern.permute.xlu0 2
    %465 = vperm.xlu0 %464, %v110
    %v466 = vpop.permute.xlu0 %465
    %468 = vset.pattern.permute.xlu0 2
    %469 = vperm.xlu0 %468, %v111
    %v470 = vpop.permute.xlu0 %469
    %472 = vset.pattern.permute.xlu0 2
    %473 = vperm.xlu0 %472, %v112
    %v474 = vpop.permute.xlu0 %473
    %476 = vset.pattern.permute.xlu0 2
    %477 = vperm.xlu0 %476, %v113
    %v478 = vpop.permute.xlu0 %477
    %480 = vset.pattern.permute.xlu0 2
    %481 = vperm.xlu0 %480, %v114
    %v482 = vpop.permute.xlu0 %481
    %484 = vset.pattern.permute.xlu0 2
    %485 = vperm.xlu0 %484, %v115
    %v486 = vpop.permute.xlu0 %485
    %488 = vset.pattern.permute.xlu0 2
    %489 = vperm.xlu0 %488, %v116
    %v490 = vpop.permute.xlu0 %489
    %492 = vset.pattern.permute.xlu0 2
    %493 = vperm.xlu0 %492, %v117
    %v494 = vpop.permute.xlu0 %493
    %496 = vset.pattern.permute.xlu0 2
    %497 = vperm.xlu0 %496, %v118
    %v498 = vpop.permute.xlu0 %497
    %500 = vset.pattern.permute.xlu0 2
    %501 = vperm.xlu0 %500, %v119
    %v502 = vpop.permute.xlu0 %501
    %504 = vset.pattern.permute.xlu0 2
    %505 = vperm.xlu0 %504, %v120
    %v506 = vpop.permute.xlu0 %505
    %508 = vset.pattern.permute.xlu0 2
    %509 = vperm.xlu0 %508, %v121
    %v510 = vpop.permute.xlu0 %509
    %v513 = vlaneseq
    %v514 = vshrl.u32 %v513, 7
    %v515 = vsub.s32 0, %v514
    %v516 = vrot.slane %v105, %v515
    %v517 = vlaneseq
    %v518 = vshrl.u32 %v517, 7
    %v519 = vsub.s32 1, %v518
    %v520 = vrot.slane %v105, %v519
    %v523 = vsub.f32 %v450, %v516
    %v524 = vsub.f32 %v450, %v520
    %v525 = vsub.f32 %v454, %v516
    %v526 = vsub.f32 %v454, %v520
    %v527 = vsub.f32 %v458, %v516
    %v528 = vsub.f32 %v458, %v520
    %v529 = vsub.f32 %v462, %v516
    %v530 = vsub.f32 %v462, %v520
    %v531 = vsub.f32 %v466, %v516
    %v532 = vsub.f32 %v466, %v520
    %v533 = vsub.f32 %v470, %v516
    %v534 = vsub.f32 %v470, %v520
    %v535 = vsub.f32 %v474, %v516
    %v536 = vsub.f32 %v474, %v520
    %v537 = vsub.f32 %v478, %v516
    %v538 = vsub.f32 %v478, %v520
    %v539 = vsub.f32 %v482, %v516
    %v540 = vsub.f32 %v482, %v520
    %v541 = vsub.f32 %v486, %v516
    %v542 = vsub.f32 %v486, %v520
    %v543 = vsub.f32 %v490, %v516
    %v544 = vsub.f32 %v490, %v520
    %v545 = vsub.f32 %v494, %v516
    %v546 = vsub.f32 %v494, %v520
    %v547 = vsub.f32 %v498, %v516
    %v548 = vsub.f32 %v498, %v520
    %v549 = vsub.f32 %v502, %v516
    %v550 = vsub.f32 %v502, %v520
    %v551 = vsub.f32 %v506, %v516
    %v552 = vsub.f32 %v506, %v520
    %v553 = vsub.f32 %v510, %v516
    %v554 = vsub.f32 %v510, %v520
    %v555 = vmul.f32 %v523, %v523
    %v556 = vmul.f32 %v524, %v524
    %v557 = vmul.f32 %v525, %v525
    %v558 = vmul.f32 %v526, %v526
    %v559 = vmul.f32 %v527, %v527
    %v560 = vmul.f32 %v528, %v528
    %v561 = vmul.f32 %v529, %v529
    %v562 = vmul.f32 %v530, %v530
    %v563 = vmul.f32 %v531, %v531
    %v564 = vmul.f32 %v532, %v532
    %v565 = vmul.f32 %v533, %v533
    %v566 = vmul.f32 %v534, %v534
    %v567 = vmul.f32 %v535, %v535
    %v568 = vmul.f32 %v536, %v536
    %v569 = vmul.f32 %v537, %v537
    %v570 = vmul.f32 %v538, %v538
    %v571 = vmul.f32 %v539, %v539
    %v572 = vmul.f32 %v540, %v540
    %v573 = vmul.f32 %v541, %v541
    %v574 = vmul.f32 %v542, %v542
    %v575 = vmul.f32 %v543, %v543
    %v576 = vmul.f32 %v544, %v544
    %v577 = vmul.f32 %v545, %v545
    %v578 = vmul.f32 %v546, %v546
    %v579 = vmul.f32 %v547, %v547
    %v580 = vmul.f32 %v548, %v548
    %v581 = vmul.f32 %v549, %v549
    %v582 = vmul.f32 %v550, %v550
    %v583 = vmul.f32 %v551, %v551
    %v584 = vmul.f32 %v552, %v552
    %v585 = vmul.f32 %v553, %v553
    %v586 = vmul.f32 %v554, %v554
    %v587 = vadd.f32 %v416, %v555
    %v588 = vadd.f32 %v417, %v556
    %v589 = vadd.f32 %v418, %v557
    %v590 = vadd.f32 %v419, %v558
    %v591 = vadd.f32 %v420, %v559
    %v592 = vadd.f32 %v421, %v560
    %v593 = vadd.f32 %v422, %v561
    %v594 = vadd.f32 %v423, %v562
    %v595 = vadd.f32 %v424, %v563
    %v596 = vadd.f32 %v425, %v564
    %v597 = vadd.f32 %v426, %v565
    %v598 = vadd.f32 %v427, %v566
    %v599 = vadd.f32 %v428, %v567
    %v600 = vadd.f32 %v429, %v568
    %v601 = vadd.f32 %v430, %v569
    %v602 = vadd.f32 %v431, %v570
    %v603 = vadd.f32 %v432, %v571
    %v604 = vadd.f32 %v433, %v572
    %v605 = vadd.f32 %v434, %v573
    %v606 = vadd.f32 %v435, %v574
    %v607 = vadd.f32 %v436, %v575
    %v608 = vadd.f32 %v437, %v576
    %v609 = vadd.f32 %v438, %v577
    %v610 = vadd.f32 %v439, %v578
    %v611 = vadd.f32 %v440, %v579
    %v612 = vadd.f32 %v441, %v580
    %v613 = vadd.f32 %v442, %v581
    %v614 = vadd.f32 %v443, %v582
    %v615 = vadd.f32 %v444, %v583
    %v616 = vadd.f32 %v445, %v584
    %v617 = vadd.f32 %v446, %v585
    %v618 = vadd.f32 %v447, %v586
    %v619 = vmin.f32 %v587, %v591
    %v620 = vmin.f32 %v589, %v593
    %v621 = vmin.f32 %v619, %v595
    %v622 = vmin.f32 %v620, %v597
    %v623 = vmin.f32 %v621, %v599
    %v624 = vmin.f32 %v622, %v601
    %v625 = vmin.f32 %v623, %v603
    %v626 = vmin.f32 %v624, %v605
    %v627 = vmin.f32 %v625, %v607
    %v628 = vmin.f32 %v626, %v609
    %v629 = vmin.f32 %v627, %v611
    %v630 = vmin.f32 %v628, %v613
    %v631 = vmin.f32 %v629, %v615
    %v632 = vmin.f32 %v630, %v617
    %v633 = vmin.f32 %v631, %v632
    %v634 = vrot.slane %v633, 4
    %v635 = vmin.f32 %v633, %v634
    %v636 = vrot.slane %v635, 2
    %v637 = vmin.f32 %v635, %v636
    %v638 = vrot.slane %v637, 1
    %v639 = vmin.f32 %v637, %v638
    %v640 = vmin.f32 %v588, %v592
    %v641 = vmin.f32 %v590, %v594
    %v642 = vmin.f32 %v640, %v596
    %v643 = vmin.f32 %v641, %v598
    %v644 = vmin.f32 %v642, %v600
    %v645 = vmin.f32 %v643, %v602
    %v646 = vmin.f32 %v644, %v604
    %v647 = vmin.f32 %v645, %v606
    %v648 = vmin.f32 %v646, %v608
    %v649 = vmin.f32 %v647, %v610
    %v650 = vmin.f32 %v648, %v612
    %v651 = vmin.f32 %v649, %v614
    %v652 = vmin.f32 %v650, %v616
    %v653 = vmin.f32 %v651, %v618
    %v654 = vmin.f32 %v652, %v653
    %v655 = vrot.slane %v654, 4
    %v656 = vmin.f32 %v654, %v655
    %v657 = vrot.slane %v656, 2
    %v658 = vmin.f32 %v656, %v657
    %v659 = vrot.slane %v658, 1
    %v660 = vmin.f32 %v658, %v659
    %vm661 = vcmp.le.f32.partialorder %v587, %v639
    %vm662 = vcmp.le.f32.partialorder %v588, %v660
    %vm663 = vcmp.le.f32.partialorder %v589, %v639
    %vm664 = vcmp.le.f32.partialorder %v590, %v660
    %vm665 = vcmp.le.f32.partialorder %v591, %v639
    %vm666 = vcmp.le.f32.partialorder %v592, %v660
    %vm667 = vcmp.le.f32.partialorder %v593, %v639
    %vm668 = vcmp.le.f32.partialorder %v594, %v660
    %vm669 = vcmp.le.f32.partialorder %v595, %v639
    %vm670 = vcmp.le.f32.partialorder %v596, %v660
    %vm671 = vcmp.le.f32.partialorder %v597, %v639
    %vm672 = vcmp.le.f32.partialorder %v598, %v660
    %vm673 = vcmp.le.f32.partialorder %v599, %v639
    %vm674 = vcmp.le.f32.partialorder %v600, %v660
    %vm675 = vcmp.le.f32.partialorder %v601, %v639
    %vm676 = vcmp.le.f32.partialorder %v602, %v660
    %vm677 = vcmp.le.f32.partialorder %v603, %v639
    %vm678 = vcmp.le.f32.partialorder %v604, %v660
    %vm679 = vcmp.le.f32.partialorder %v605, %v639
    %vm680 = vcmp.le.f32.partialorder %v606, %v660
    %vm681 = vcmp.le.f32.partialorder %v607, %v639
    %vm682 = vcmp.le.f32.partialorder %v608, %v660
    %vm683 = vcmp.le.f32.partialorder %v609, %v639
    %vm684 = vcmp.le.f32.partialorder %v610, %v660
    %vm685 = vcmp.le.f32.partialorder %v611, %v639
    %vm686 = vcmp.le.f32.partialorder %v612, %v660
    %vm687 = vcmp.le.f32.partialorder %v613, %v639
    %vm688 = vcmp.le.f32.partialorder %v614, %v660
    %vm689 = vcmp.le.f32.partialorder %v615, %v639
    %vm690 = vcmp.le.f32.partialorder %v616, %v660
    %vm691 = vcmp.le.f32.partialorder %v617, %v639
    %vm692 = vcmp.le.f32.partialorder %v618, %v660
    %v693 = vsel %vm661, 1, 0
    %v694 = vsel %vm662, 1, 0
    %v695 = vsel %vm663, 1, 0
    %v696 = vsel %vm664, 1, 0
    %v697 = vsel %vm665, 1, 0
    %v698 = vsel %vm666, 1, 0
    %v699 = vsel %vm667, 1, 0
    %v700 = vsel %vm668, 1, 0
    %v701 = vsel %vm669, 1, 0
    %v702 = vsel %vm670, 1, 0
    %v703 = vsel %vm671, 1, 0
    %v704 = vsel %vm672, 1, 0
    %v705 = vsel %vm673, 1, 0
    %v706 = vsel %vm674, 1, 0
    %v707 = vsel %vm675, 1, 0
    %v708 = vsel %vm676, 1, 0
    %v709 = vsel %vm677, 1, 0
    %v710 = vsel %vm678, 1, 0
    %v711 = vsel %vm679, 1, 0
    %v712 = vsel %vm680, 1, 0
    %v713 = vsel %vm681, 1, 0
    %v714 = vsel %vm682, 1, 0
    %v715 = vsel %vm683, 1, 0
    %v716 = vsel %vm684, 1, 0
    %v717 = vsel %vm685, 1, 0
    %v718 = vsel %vm686, 1, 0
    %v719 = vsel %vm687, 1, 0
    %v720 = vsel %vm688, 1, 0
    %v721 = vsel %vm689, 1, 0
    %v722 = vsel %vm690, 1, 0
    %v723 = vsel %vm691, 1, 0
    %v724 = vsel %vm692, 1, 0
    %v725 = vcvt.s32.f32 %v693
    %v726 = vcvt.s32.f32 %v694
    %v727 = vcvt.s32.f32 %v695
    %v728 = vcvt.s32.f32 %v696
    %v729 = vcvt.s32.f32 %v697
    %v730 = vcvt.s32.f32 %v698
    %v731 = vcvt.s32.f32 %v699
    %v732 = vcvt.s32.f32 %v700
    %v733 = vcvt.s32.f32 %v701
    %v734 = vcvt.s32.f32 %v702
    %v735 = vcvt.s32.f32 %v703
    %v736 = vcvt.s32.f32 %v704
    %v737 = vcvt.s32.f32 %v705
    %v738 = vcvt.s32.f32 %v706
    %v739 = vcvt.s32.f32 %v707
    %v740 = vcvt.s32.f32 %v708
    %v741 = vcvt.s32.f32 %v709
    %v742 = vcvt.s32.f32 %v710
    %v743 = vcvt.s32.f32 %v711
    %v744 = vcvt.s32.f32 %v712
    %v745 = vcvt.s32.f32 %v713
    %v746 = vcvt.s32.f32 %v714
    %v747 = vcvt.s32.f32 %v715
    %v748 = vcvt.s32.f32 %v716
    %v749 = vcvt.s32.f32 %v717
    %v750 = vcvt.s32.f32 %v718
    %v751 = vcvt.s32.f32 %v719
    %v752 = vcvt.s32.f32 %v720
    %v753 = vcvt.s32.f32 %v721
    %v754 = vcvt.s32.f32 %v722
    %v755 = vcvt.s32.f32 %v723
    %v756 = vcvt.s32.f32 %v724
    %v757 = vpack.c.bf16 %v727, %v725
    %v758 = vpack.c.bf16 %v728, %v726
    %v759 = vpack.c.bf16 %v731, %v729
    %v760 = vpack.c.bf16 %v732, %v730
    %v761 = vpack.c.bf16 %v735, %v733
    %v762 = vpack.c.bf16 %v736, %v734
    %v763 = vpack.c.bf16 %v739, %v737
    %v764 = vpack.c.bf16 %v740, %v738
    %v765 = vpack.c.bf16 %v743, %v741
    %v766 = vpack.c.bf16 %v744, %v742
    %v767 = vpack.c.bf16 %v747, %v745
    %v768 = vpack.c.bf16 %v748, %v746
    %v769 = vpack.c.bf16 %v751, %v749
    %v770 = vpack.c.bf16 %v752, %v750
    %v771 = vpack.c.bf16 %v755, %v753
    %v772 = vpack.c.bf16 %v756, %v754
    %v773 = vld [vmem:[#allocation10] sm:$0xf]
    %v774 = vld [vmem:[#allocation10 + $0x4] sm:$0xf]
    %v775 = vld [vmem:[#allocation11] sm:$0xf]
    %v776 = vld [vmem:[#allocation11 + $0x4] sm:$0xf]
    %v779 = vunpack.c.l.b16 %v775
    %v780 = vunpack.c.l.b16 %v776
    %v781 = vpack.c.b16 %v780, %v779
    %783 = vmatprep.subr.bf16.mxu0 %v758
    %784 = vmatpush1.bf16.msra.mxu0 %v757
    %785 = vmatprep.subr.bf16.mxu0 %v760
    %786 = vmatpush1.bf16.msra.mxu0 %v759
    %787 = vmatprep.subr.bf16.mxu0 %v762
    %788 = vmatpush1.bf16.msra.mxu0 %v761
    %789 = vmatprep.subr.bf16.mxu0 %v764
    %790 = vmatpush1.bf16.msra.mxu0 %v763
    %791 = vmatprep.subr.bf16.mxu0 %v766
    %792 = vmatpush1.bf16.msra.mxu0 %v765
    %793 = vmatprep.subr.bf16.mxu0 %v768
    %794 = vmatpush1.bf16.msra.mxu0 %v767
    %795 = vmatprep.subr.bf16.mxu0 %v770
    %796 = vmatpush1.bf16.msra.mxu0 %v769
    %797 = vmatprep.subr.bf16.mxu0 %v772
    %798 = vmatpush1.bf16.msra.mxu0 %v771
    %799 = vmatprep.subr.bf16.mxu0 0
    %800 = vmatpush1.bf16.msra.mxu0 0
    %801 = vmatprep.subr.bf16.mxu0 0
    %802 = vmatpush1.bf16.msra.mxu0 0
    %803 = vmatprep.subr.bf16.mxu0 0
    %804 = vmatpush1.bf16.msra.mxu0 0
    %805 = vmatprep.subr.bf16.mxu0 0
    %806 = vmatpush1.bf16.msra.mxu0 0
    %807 = vmatprep.subr.bf16.mxu0 0
    %808 = vmatpush1.bf16.msra.mxu0 0
    %809 = vmatprep.subr.bf16.mxu0 0
    %810 = vmatpush1.bf16.msra.mxu0 0
    %811 = vmatprep.subr.bf16.mxu0 0
    %812 = vmatpush1.bf16.msra.mxu0 0
    %813 = vmatprep.subr.bf16.mxu0 0
    %814 = vmatpush1.bf16.msra.mxu0 0
    %815 = vmatprep.mubr.bf16.mxu0 0
    %816 = vmatmul.mubr.bf16.gmra.mrb[0].mxu0 %v781
    %v817 = vpop.f32.mrb[0].mxu0
    %v818 = vadd.f32 0.0, %v817
    %v819 = vpop.f32.mrb[0].mxu0
    %v820 = vadd.f32 0.0, %v819
    %v821 = vpop.f32.mrb[0].mxu0
    %v822 = vadd.f32 0.0, %v821
    %v823 = vpop.f32.mrb[0].mxu0
    %v824 = vadd.f32 0.0, %v823
    %825 = vdwg.mxu0
    %v828 = vunpack.c.l.b16 %v773
    %v829 = vunpack.c.l.b16 %v774
    %v830 = vpack.c.b16 %v829, %v828
    %832 = vmatprep.subr.bf16.mxu0 %v758
    %833 = vmatpush1.bf16.msra.mxu0 %v757
    %834 = vmatprep.subr.bf16.mxu0 %v760
    %835 = vmatpush1.bf16.msra.mxu0 %v759
    %836 = vmatprep.subr.bf16.mxu0 %v762
    %837 = vmatpush1.bf16.msra.mxu0 %v761
    %838 = vmatprep.subr.bf16.mxu0 %v764
    %839 = vmatpush1.bf16.msra.mxu0 %v763
    %840 = vmatprep.subr.bf16.mxu0 %v766
    %841 = vmatpush1.bf16.msra.mxu0 %v765
    %842 = vmatprep.subr.bf16.mxu0 %v768
    %843 = vmatpush1.bf16.msra.mxu0 %v767
    %844 = vmatprep.subr.bf16.mxu0 %v770
    %845 = vmatpush1.bf16.msra.mxu0 %v769
    %846 = vmatprep.subr.bf16.mxu0 %v772
    %847 = vmatpush1.bf16.msra.mxu0 %v771
    %848 = vmatprep.subr.bf16.mxu0 0
    %849 = vmatpush1.bf16.msra.mxu0 0
    %850 = vmatprep.subr.bf16.mxu0 0
    %851 = vmatpush1.bf16.msra.mxu0 0
    %852 = vmatprep.subr.bf16.mxu0 0
    %853 = vmatpush1.bf16.msra.mxu0 0
    %854 = vmatprep.subr.bf16.mxu0 0
    %855 = vmatpush1.bf16.msra.mxu0 0
    %856 = vmatprep.subr.bf16.mxu0 0
    %857 = vmatpush1.bf16.msra.mxu0 0
    %858 = vmatprep.subr.bf16.mxu0 0
    %859 = vmatpush1.bf16.msra.mxu0 0
    %860 = vmatprep.subr.bf16.mxu0 0
    %861 = vmatpush1.bf16.msra.mxu0 0
    %862 = vmatprep.subr.bf16.mxu0 0
    %863 = vmatpush1.bf16.msra.mxu0 0
    %864 = vmatprep.mubr.bf16.mxu0 0
    %865 = vmatmul.mubr.bf16.gmra.mrb[0].mxu0 %v830
    %v866 = vpop.f32.mrb[0].mxu0
    %v867 = vadd.f32 %v818, %v866
    %v868 = vpop.f32.mrb[0].mxu0
    %v869 = vadd.f32 %v820, %v868
    %v870 = vpop.f32.mrb[0].mxu0
    %v871 = vadd.f32 %v822, %v870
    %v872 = vpop.f32.mrb[0].mxu0
    %v873 = vadd.f32 %v824, %v872
    %874 = vdwg.mxu0
    %v875 = vld [vmem:[#allocation2] sm:$0x3]
    %v876 = vld [vmem:[#allocation3] sm:$0xff]
    %v877 = vld [vmem:[#allocation3 + $0x8] sm:$0xff]
    %v878 = vld [vmem:[#allocation3 + $0x10] sm:$0xff]
    %v879 = vld [vmem:[#allocation3 + $0x18] sm:$0xff]
    %v881 = vlaneseq
    %v882 = vshrl.u32 %v881, 7
    %v883 = vsub.s32 0, %v882
    %v884 = vrot.slane %v875, %v883
    %v885 = vlaneseq
    %v886 = vshrl.u32 %v885, 7
    %v887 = vsub.s32 1, %v886
    %v888 = vrot.slane %v875, %v887
    %vm891 = vcmp.lt.f32.partialorder %v639, %v884
    %vm892 = vcmp.lt.f32.partialorder %v660, %v888
    %vm893 = vcmp.eq.f32.partialorder %v639, %v884
    %vm894 = vcmp.eq.f32.partialorder %v660, %v888
    %v897 = vcombine.low %v639, %v660
    %v899 = vunpack.c.l.s4 1966171168
    %v900 = vunpack.c.0.s8 %v899
    %v901 = vlaneseq
    %v902 = vshrl.u32 %v901, 7
    %v903 = vsub.s32 %v900, %v902
    %v904 = vrot.slane %v897, %v903
    %v906 = vunpack.c.l.s4 1966171168
    %v907 = vunpack.c.0.s8 %v906
    %v908 = vlaneseq
    %v909 = vshrl.u32 %v908, 7
    %v910 = vsub.s32 %v907, %v909
    %v911 = vrot.slane %v904, %v910
    %v913 = vmin.f32 %v875, %v911
    %v914 = vlaneseq
    %vm915 = vcmp.ge.s32.totalorder %v914, 0
    %vm916 = vcmp.lt.s32.totalorder %v914, 256
    %vm917 = vmand %vm915, %vm916
    %918 = vst.msk [vmem:[#allocation2] sm:$0x3] %vm917, %v913
    %v919 = vadd.f32 %v876, %v867
    %v920 = vadd.f32 %v877, %v869
    %v921 = vadd.f32 %v878, %v871
    %v922 = vadd.f32 %v879, %v873
    %v923 = vsel %vm893, 1, 0
    %v924 = vsel %vm894, 1, 0
    %v925 = vlaneseq
    %v926 = vshrl.u32 %v925, 7
    %v927 = vsub.s32 0, %v926
    %v928 = vrot.slane %v923, %v927
    %v929 = vlaneseq
    %v930 = vshrl.u32 %v929, 7
    %v931 = vsub.s32 0, %v930
    %v932 = vrot.slane %v924, %v931
    %vm933 = vcmp.eq.s32.totalorder %v928, 1
    %vm934 = vcmp.eq.s32.totalorder %v932, 1
    %v935 = vsel %vm933, %v919, %v876
    %v936 = vsel %vm934, %v920, %v877
    %v937 = vsel %vm933, %v921, %v878
    %v938 = vsel %vm934, %v922, %v879
    %v939 = vsel %vm891, 1, 0
    %v940 = vsel %vm892, 1, 0
    %v941 = vlaneseq
    %v942 = vshrl.u32 %v941, 7
    %v943 = vsub.s32 0, %v942
    %v944 = vrot.slane %v939, %v943
    %v945 = vlaneseq
    %v946 = vshrl.u32 %v945, 7
    %v947 = vsub.s32 0, %v946
    %v948 = vrot.slane %v940, %v947
    %vm949 = vcmp.eq.s32.totalorder %v944, 1
    %vm950 = vcmp.eq.s32.totalorder %v948, 1
    %v951 = vsel %vm949, %v867, %v935
    %v952 = vsel %vm950, %v869, %v936
    %v953 = vsel %vm949, %v871, %v937
    %v954 = vsel %vm950, %v873, %v938
    %955 = vst [vmem:[#allocation3] sm:$0xff] %v951
    %956 = vst [vmem:[#allocation3 + $0x8] sm:$0xff] %v952
    %957 = vst [vmem:[#allocation3 + $0x10] sm:$0xff] %v953
    %958 = vst [vmem:[#allocation3 + $0x18] sm:$0xff] %v954
    // Predicated region
    $region42: #{uresnet_ppn_loss.1} parent=1 // pred_check
      %p959 = pneg %p81
    $region43: #{uresnet_ppn_loss.1} parent=1 // pred_check_branch
      %961 = sbr.rel (%p959) target = $region45
    $region44: #{uresnet_ppn_loss.1} parent=1 // pred_region
      %s962 = scalar_lea.vmem [#allocation5], 5
      %v963 = vld [vmem:[%s962] ss:$8 sm:$0x3]
      %s964 = scalar_lea.vmem [#allocation5], 6
      %v965 = vld [vmem:[%s964] ss:$8 sm:$0x3]
      %s966 = scalar_lea.vmem [#allocation5], 23
      %v967 = vld [vmem:[%s966] ss:$8 sm:$0x3]
      %v968 = vld [vmem:[#allocation5] ss:$8 sm:$0x3]
      %s969 = scalar_lea.vmem [#allocation5], 1
      %v970 = vld [vmem:[%s969] ss:$8 sm:$0x3]
      %s971 = scalar_lea.vmem [#allocation5], 2
      %v972 = vld [vmem:[%s971] ss:$8 sm:$0x3]
      %s973 = scalar_lea.vmem [#allocation5], 3
      %v974 = vld [vmem:[%s973] ss:$8 sm:$0x3]
      %s975 = scalar_lea.vmem [#allocation5], 4
      %v976 = vld [vmem:[%s975] ss:$8 sm:$0x3]
      %v977 = vmax.f32 %v968, %v970
      %v978 = vmax.f32 %v977, %v972
      %v979 = vmax.f32 %v978, %v974
      %v980 = vmax.f32 %v979, %v976
      %v981 = vsub.f32 %v968, %v980
      %v982 = vmul.f32 %v981, 1.442695
      %v983 = vpow.pop %v982
      %v984 = vadd.f32 %v983, 0.0
      %vm985 = vcmp.eq.f32.partialorder %v963, 0.0
      %v986 = vsel %vm985, %v981, 0.0
      %vm987 = vcmp.ge.f32.partialorder %v968, %v980
      %vm988 = vmand %vm985, %vm987
      %v989 = vsel %vm988, 1.0, 0.0
      %v990 = vsub.f32 %v970, %v980
      %v991 = vmul.f32 %v990, 1.442695
      %v992 = vpow.pop %v991
      %v993 = vadd.f32 %v984, %v992
      %vm994 = vcmp.eq.f32.partialorder %v963, 1.0
      %v995 = vsel %vm994, %v990, %v986
      %vm996 = vcmp.ge.f32.partialorder %v970, %v980
      %vm997 = vmand %vm994, %vm996
      %v998 = vsel %vm997, 1.0, %v989
      %v999 = vsub.f32 %v972, %v980
      %v1000 = vmul.f32 %v999, 1.442695
      %v1001 = vpow.pop %v1000
      %v1002 = vadd.f32 %v993, %v1001
      %vm1003 = vcmp.eq.f32.partialorder %v963, 2.0
      %v1004 = vsel %vm1003, %v999, %v995
      %vm1005 = vcmp.ge.f32.partialorder %v972, %v980
      %vm1006 = vmand %vm1003, %vm1005
      %v1007 = vsel %vm1006, 1.0, %v998
      %v1008 = vsub.f32 %v974, %v980
      %v1009 = vmul.f32 %v1008, 1.442695
      %v1010 = vpow.pop %v1009
      %v1011 = vadd.f32 %v1002, %v1010
      %vm1012 = vcmp.eq.f32.partialorder %v963, 3.0
      %v1013 = vsel %vm1012, %v1008, %v1004
      %vm1014 = vcmp.ge.f32.partialorder %v974, %v980
      %vm1015 = vmand %vm1012, %vm1014
      %v1016 = vsel %vm1015, 1.0, %v1007
      %v1017 = vsub.f32 %v976, %v980
      %v1018 = vmul.f32 %v1017, 1.442695
      %v1019 = vpow.pop %v1018
      %v1020 = vadd.f32 %v1011, %v1019
      %vm1021 = vcmp.eq.f32.partialorder %v963, 4.0
      %v1022 = vsel %vm1021, %v1017, %v1013
      %vm1023 = vcmp.ge.f32.partialorder %v976, %v980
      %vm1024 = vmand %vm1021, %vm1023
      %v1025 = vsel %vm1024, 1.0, %v1016
      %v1026 = vlog2.pop %v1020
      %v1027 = vmul.f32 %v1026, 0.6931472
      %v1028 = vsub.f32 %v1027, %v1022
      %v1029 = vmul.f32 %v965, %v1028
      %v1030 = vmul.f32 %v1025, %v967
      %v1031 = vld [vmem:[#allocation2] sm:$0x3]
      %v1032 = vld [vmem:[#allocation3] sm:$0xff]
      %v1033 = vld [vmem:[#allocation3 + $0x8] sm:$0xff]
      %vm1034 = vcmp.lt.f32.partialorder %v1031, 9.0
      %v1035 = vsel %vm1034, 1, 0
      %v1036 = vcvt.s32.f32 %v1035
      %v1037 = vmul.f32 %v1036, %v967
      %vm1038 = vcmp.gt.f32.partialorder %v1032, 1.0
      %vm1039 = vcmp.gt.f32.partialorder %v1033, 1.0
      %v1040 = vmax.f32 %v1032, 1.0
      %v1041 = vmax.f32 %v1033, 1.0
      %v1042 = vrcp.pop %v1040
      %v1043 = vrcp.pop %v1041
      %v1044 = vsel %vm1038, %v1042, 1.0
      %v1045 = vsel %vm1039, %v1043, 1.0
      %v1048 = vrot.slane %v1044, 3
      %v1049 = vrot.slane %v1045, 3
      %v1052 = vmul.f32 %v1032, %v1048
      %v1053 = vmul.f32 %v1033, %v1049
      %v1054 = vsub.f32 %v1052, %v206
      %v1055 = vsub.f32 %v1053, %v210
      %s1056 = scalar_lea.vmem [#allocation5], 18
      %v1057 = vld [vmem:[%s1056] ss:$8 sm:$0x3]
      %v1060 = vcombine.low %v1054, %v1055
      %v1062 = vunpack.c.l.s4 1966171168
      %v1063 = vunpack.c.0.s8 %v1062
      %v1064 = vlaneseq
      %v1065 = vshrl.u32 %v1064, 7
      %v1066 = vsub.s32 %v1063, %v1065
      %v1067 = vrot.slane %v1060, %v1066
      %v1069 = vunpack.c.l.s4 1966171168
      %v1070 = vunpack.c.0.s8 %v1069
      %v1071 = vlaneseq
      %v1072 = vshrl.u32 %v1071, 7
      %v1073 = vsub.s32 %v1070, %v1072
      %v1074 = vrot.slane %v1067, %v1073
      %v1076 = vsub.f32 %v1057, %v1074
      %v1077 = vmul.f32 %v1076, %v1076
      %v1078 = vrot.slane %v1044, 2
      %v1079 = vrot.slane %v1045, 2
      %v1082 = vmul.f32 %v1032, %v1078
      %v1083 = vmul.f32 %v1033, %v1079
      %v1084 = vsub.f32 %v1082, %v345
      %v1085 = vsub.f32 %v1083, %v349
      %s1086 = scalar_lea.vmem [#allocation5], 19
      %v1087 = vld [vmem:[%s1086] ss:$8 sm:$0x3]
      %v1090 = vcombine.low %v1084, %v1085
      %v1092 = vunpack.c.l.s4 1966171168
      %v1093 = vunpack.c.0.s8 %v1092
      %v1094 = vlaneseq
      %v1095 = vshrl.u32 %v1094, 7
      %v1096 = vsub.s32 %v1093, %v1095
      %v1097 = vrot.slane %v1090, %v1096
      %v1098 = vcombine.high %v1097, %v1097
      %v1100 = vunpack.c.l.s4 1966171168
      %v1101 = vunpack.c.0.s8 %v1100
      %v1102 = vlaneseq
      %v1103 = vshrl.u32 %v1102, 7
      %v1104 = vsub.s32 %v1101, %v1103
      %v1105 = vrot.slane %v1098, %v1104
      %v1107 = vsub.f32 %v1087, %v1105
      %v1108 = vmul.f32 %v1107, %v1107
      %v1109 = vadd.f32 %v1077, %v1108
      %v1110 = vrot.slane %v1044, 1
      %v1111 = vrot.slane %v1045, 1
      %v1114 = vmul.f32 %v1032, %v1110
      %v1115 = vmul.f32 %v1033, %v1111
      %v1116 = vsub.f32 %v1114, %v516
      %v1117 = vsub.f32 %v1115, %v520
      %s1118 = scalar_lea.vmem [#allocation5], 20
      %v1119 = vld [vmem:[%s1118] ss:$8 sm:$0x3]
      %v1122 = vcombine.low %v1116, %v1117
      %v1124 = vunpack.c.l.s4 1966171168
      %v1125 = vunpack.c.0.s8 %v1124
      %v1126 = vlaneseq
      %v1127 = vshrl.u32 %v1126, 7
      %v1128 = vsub.s32 %v1125, %v1127
      %v1129 = vrot.slane %v1122, %v1128
      %v1131 = vunpack.c.l.s4 1966171168
      %v1132 = vunpack.c.0.s8 %v1131
      %v1133 = vlaneseq
      %v1134 = vshrl.u32 %v1133, 7
      %v1135 = vsub.s32 %v1132, %v1134
      %v1136 = vrot.slane %v1129, %v1135
      %v1137 = vcombine.high %v1136, %v1136
      %v1139 = vsub.f32 %v1119, %v1137
      %v1140 = vmul.f32 %v1139, %v1139
      %v1141 = vadd.f32 %v1109, %v1140
      %s1142 = scalar_lea.vmem [#allocation5], 22
      %v1143 = vld [vmem:[%s1142] ss:$8 sm:$0x3]
      %s1144 = scalar_lea.vmem [#allocation5], 21
      %v1145 = vld [vmem:[%s1144] ss:$8 sm:$0x3]
      %v1146 = vsub.f32 %v1143, %v1145
      %v1147 = vmax.f32 %v1146, 0.0
      %v1148 = vand.u32 2147483647, %v1146
      %v1149 = vsub.f32 0.0, %v1148
      %v1150 = vmul.f32 %v1149, 1.442695
      %v1151 = vpow.pop %v1150
      %v1152 = vadd.f32 %v1151, 1.0
      %v1153 = vlog2.pop %v1152
      %v1154 = vmul.f32 %v1153, 0.6931472
      %v1155 = vadd.f32 %v1147, %v1154
      %v1156 = vmul.f32 %v1036, %v1146
      %v1157 = vsub.f32 %v1155, %v1156
      %v1158 = vmul.f32 %v1157, %v967
      %vm1159 = vcmp.gt.f32.partialorder %v1146, 0.0
      %vm1160 = vcmp.gt.f32.partialorder %v1036, 0.5
      %vm1161 = vmxor %vm1159, %vm1160
      %vm1162 = vmxor %vm1161, 1
      %v1163 = vsel %vm1162, 1, 0
      %v1164 = vcvt.s32.f32 %v1163
      %v1165 = vmul.f32 %v1164, %v967
      %v1166 = vmul.f32 %v1037, %v1141
      %v1167 = vld [vmem:[#allocation4] ss:$8 sm:$0x3]
      %v1168 = vadd.f32 %v1167, %v1029
      %1169 = vst.msk [vmem:[#allocation4] ss:$8 sm:$0x3] %vm917, %v1168
      %1170 = vst.msk [vmem:[#allocation4] ss:$8 sm:$0x0] %vm917, %v1168
      %s1171 = scalar_lea.vmem [#allocation4], 1
      %v1172 = vld [vmem:[%s1171] ss:$8 sm:$0x3]
      %v1173 = vadd.f32 %v1172, %v965
      %1174 = vst.msk [vmem:[%s1171] ss:$8 sm:$0x3] %vm917, %v1173
      %1175 = vst.msk [vmem:[%s1171] ss:$8 sm:$0x0] %vm917, %v1173
      %s1176 = scalar_lea.vmem [#allocation4], 2
      %v1177 = vld [vmem:[%s1176] ss:$8 sm:$0x3]
      %v1178 = vadd.f32 %v1177, %v1030
      %1179 = vst.msk [vmem:[%s1176] ss:$8 sm:$0x3] %vm917, %v1178
      %1180 = vst.msk [vmem:[%s1176] ss:$8 sm:$0x0] %vm917, %v1178
      %s1181 = scalar_lea.vmem [#allocation4], 3
      %v1182 = vld [vmem:[%s1181] ss:$8 sm:$0x3]
      %v1183 = vadd.f32 %v1182, %v1158
      %1184 = vst.msk [vmem:[%s1181] ss:$8 sm:$0x3] %vm917, %v1183
      %1185 = vst.msk [vmem:[%s1181] ss:$8 sm:$0x0] %vm917, %v1183
      %s1186 = scalar_lea.vmem [#allocation4], 4
      %v1187 = vld [vmem:[%s1186] ss:$8 sm:$0x3]
      %v1188 = vadd.f32 %v1187, %v1166
      %1189 = vst.msk [vmem:[%s1186] ss:$8 sm:$0x3] %vm917, %v1188
      %1190 = vst.msk [vmem:[%s1186] ss:$8 sm:$0x0] %vm917, %v1188
      %s1191 = scalar_lea.vmem [#allocation4], 5
      %v1192 = vld [vmem:[%s1191] ss:$8 sm:$0x3]
      %v1193 = vadd.f32 %v1192, %v1037
      %1194 = vst.msk [vmem:[%s1191] ss:$8 sm:$0x3] %vm917, %v1193
      %1195 = vst.msk [vmem:[%s1191] ss:$8 sm:$0x0] %vm917, %v1193
      %s1196 = scalar_lea.vmem [#allocation4], 6
      %v1197 = vld [vmem:[%s1196] ss:$8 sm:$0x3]
      %v1198 = vadd.f32 %v1197, %v1165
      %1199 = vst.msk [vmem:[%s1196] ss:$8 sm:$0x3] %vm917, %v1198
      %1200 = vst.msk [vmem:[%s1196] ss:$8 sm:$0x0] %vm917, %v1198
    $region45: #{uresnet_ppn_loss.1} parent=1 // pred_fallthru
      _
    // Predicated region
    $region46: #{uresnet_ppn_loss.1} parent=1 // pred_check
      _
    $region47: #{uresnet_ppn_loss.1} parent=1 // pred_check_branch
      %1202 = sbr.rel (%p82) target = $region49
    $region48: #{uresnet_ppn_loss.1} parent=1 // pred_region
      %v1203 = vlaneseq
      %v1204 = vand.u32 %v1203, 127
      %vm1205 = vcmp.eq.s32.totalorder %v1204, 0
      %v1206 = vld [vmem:[#allocation4] ss:$8 sm:$0x3]
      %v1208 = vlaneseq
      %v1209 = vshrl.u32 %v1208, 7
      %v1210 = vsub.s32 0, %v1209
      %v1211 = vrot.slane %v1206, %v1210
      %v1212 = vlaneseq
      %v1213 = vshrl.u32 %v1212, 7
      %v1214 = vsub.s32 1, %v1213
      %v1215 = vrot.slane %v1206, %v1214
      %vm1218 = vcmask 1040384
      %v1219 = vsel %vm1218, %v1211, 0.0
      %v1220 = vsel %vm1218, %v1215, 0.0
      %v1221 = vadd.f32 %v1219, %v1220
      %1222 = vadd.xlane.f32.xlu0 %v1221
      %v1223 = vpop.xlane.xlu0 %1222
      %v1224 = vrot.slane %v1223, 4
      %v1225 = vadd.f32 %v1223, %v1224
      %v1226 = vrot.slane %v1225, 2
      %v1227 = vadd.f32 %v1225, %v1226
      %v1228 = vrot.slane %v1227, 1
      %v1229 = vadd.f32 %v1227, %v1228
      %s1230 = vtos %v1229
      %v1231 = vstv %s1230
      %v1232 = vsel %vm1205, %v1231, 0.0
      %v1233 = vadd.f32 %v1232, 0.0
      %vm1234 = vcmp.eq.s32.totalorder %v1204, 1
      %s1235 = scalar_lea.vmem [#allocation4], 1
      %v1236 = vld [vmem:[%s1235] ss:$8 sm:$0x3]
      %v1238 = vlaneseq
      %v1239 = vshrl.u32 %v1238, 7
      %v1240 = vsub.s32 0, %v1239
      %v1241 = vrot.slane %v1236, %v1240
      %v1242 = vlaneseq
      %v1243 = vshrl.u32 %v1242, 7
      %v1244 = vsub.s32 1, %v1243
      %v1245 = vrot.slane %v1236, %v1244
      %v1248 = vsel %vm1218, %v1241, 0.0
      %v1249 = vsel %vm1218, %v1245, 0.0
      %v1250 = vadd.f32 %v1248, %v1249
      %1251 = vadd.xlane.f32.xlu0 %v1250
      %v1252 = vpop.xlane.xlu0 %1251
      %v1253 = vrot.slane %v1252, 4
      %v1254 = vadd.f32 %v1252, %v1253
      %v1255 = vrot.slane %v1254, 2
      %v1256 = vadd.f32 %v1254, %v1255
      %v1257 = vrot.slane %v1256, 1
      %v1258 = vadd.f32 %v1256, %v1257
      %s1259 = vtos %v1258
      %v1260 = vstv %s1259
      %v1261 = vsel %vm1234, %v1260, 0.0
      %v1262 = vadd.f32 %v1233, %v1261
      %vm1263 = vcmp.eq.s32.totalorder %v1204, 2
      %s1264 = scalar_lea.vmem [#allocation4], 2
      %v1265 = vld [vmem:[%s1264] ss:$8 sm:$0x3]
      %v1267 = vlaneseq
      %v1268 = vshrl.u32 %v1267, 7
      %v1269 = vsub.s32 0, %v1268
      %v1270 = vrot.slane %v1265, %v1269
      %v1271 = vlaneseq
      %v1272 = vshrl.u32 %v1271, 7
      %v1273 = vsub.s32 1, %v1272
      %v1274 = vrot.slane %v1265, %v1273
      %v1277 = vsel %vm1218, %v1270, 0.0
      %v1278 = vsel %vm1218, %v1274, 0.0
      %v1279 = vadd.f32 %v1277, %v1278
      %1280 = vadd.xlane.f32.xlu0 %v1279
      %v1281 = vpop.xlane.xlu0 %1280
      %v1282 = vrot.slane %v1281, 4
      %v1283 = vadd.f32 %v1281, %v1282
      %v1284 = vrot.slane %v1283, 2
      %v1285 = vadd.f32 %v1283, %v1284
      %v1286 = vrot.slane %v1285, 1
      %v1287 = vadd.f32 %v1285, %v1286
      %s1288 = vtos %v1287
      %v1289 = vstv %s1288
      %v1290 = vsel %vm1263, %v1289, 0.0
      %v1291 = vadd.f32 %v1262, %v1290
      %vm1292 = vcmp.eq.s32.totalorder %v1204, 3
      %s1293 = scalar_lea.vmem [#allocation4], 3
      %v1294 = vld [vmem:[%s1293] ss:$8 sm:$0x3]
      %v1296 = vlaneseq
      %v1297 = vshrl.u32 %v1296, 7
      %v1298 = vsub.s32 0, %v1297
      %v1299 = vrot.slane %v1294, %v1298
      %v1300 = vlaneseq
      %v1301 = vshrl.u32 %v1300, 7
      %v1302 = vsub.s32 1, %v1301
      %v1303 = vrot.slane %v1294, %v1302
      %v1306 = vsel %vm1218, %v1299, 0.0
      %v1307 = vsel %vm1218, %v1303, 0.0
      %v1308 = vadd.f32 %v1306, %v1307
      %1309 = vadd.xlane.f32.xlu0 %v1308
      %v1310 = vpop.xlane.xlu0 %1309
      %v1311 = vrot.slane %v1310, 4
      %v1312 = vadd.f32 %v1310, %v1311
      %v1313 = vrot.slane %v1312, 2
      %v1314 = vadd.f32 %v1312, %v1313
      %v1315 = vrot.slane %v1314, 1
      %v1316 = vadd.f32 %v1314, %v1315
      %s1317 = vtos %v1316
      %v1318 = vstv %s1317
      %v1319 = vsel %vm1292, %v1318, 0.0
      %v1320 = vadd.f32 %v1291, %v1319
      %vm1321 = vcmp.eq.s32.totalorder %v1204, 4
      %s1322 = scalar_lea.vmem [#allocation4], 4
      %v1323 = vld [vmem:[%s1322] ss:$8 sm:$0x3]
      %v1325 = vlaneseq
      %v1326 = vshrl.u32 %v1325, 7
      %v1327 = vsub.s32 0, %v1326
      %v1328 = vrot.slane %v1323, %v1327
      %v1329 = vlaneseq
      %v1330 = vshrl.u32 %v1329, 7
      %v1331 = vsub.s32 1, %v1330
      %v1332 = vrot.slane %v1323, %v1331
      %v1335 = vsel %vm1218, %v1328, 0.0
      %v1336 = vsel %vm1218, %v1332, 0.0
      %v1337 = vadd.f32 %v1335, %v1336
      %1338 = vadd.xlane.f32.xlu0 %v1337
      %v1339 = vpop.xlane.xlu0 %1338
      %v1340 = vrot.slane %v1339, 4
      %v1341 = vadd.f32 %v1339, %v1340
      %v1342 = vrot.slane %v1341, 2
      %v1343 = vadd.f32 %v1341, %v1342
      %v1344 = vrot.slane %v1343, 1
      %v1345 = vadd.f32 %v1343, %v1344
      %s1346 = vtos %v1345
      %v1347 = vstv %s1346
      %v1348 = vsel %vm1321, %v1347, 0.0
      %v1349 = vadd.f32 %v1320, %v1348
      %vm1350 = vcmp.eq.s32.totalorder %v1204, 5
      %s1351 = scalar_lea.vmem [#allocation4], 5
      %v1352 = vld [vmem:[%s1351] ss:$8 sm:$0x3]
      %v1354 = vlaneseq
      %v1355 = vshrl.u32 %v1354, 7
      %v1356 = vsub.s32 0, %v1355
      %v1357 = vrot.slane %v1352, %v1356
      %v1358 = vlaneseq
      %v1359 = vshrl.u32 %v1358, 7
      %v1360 = vsub.s32 1, %v1359
      %v1361 = vrot.slane %v1352, %v1360
      %v1364 = vsel %vm1218, %v1357, 0.0
      %v1365 = vsel %vm1218, %v1361, 0.0
      %v1366 = vadd.f32 %v1364, %v1365
      %1367 = vadd.xlane.f32.xlu0 %v1366
      %v1368 = vpop.xlane.xlu0 %1367
      %v1369 = vrot.slane %v1368, 4
      %v1370 = vadd.f32 %v1368, %v1369
      %v1371 = vrot.slane %v1370, 2
      %v1372 = vadd.f32 %v1370, %v1371
      %v1373 = vrot.slane %v1372, 1
      %v1374 = vadd.f32 %v1372, %v1373
      %s1375 = vtos %v1374
      %v1376 = vstv %s1375
      %v1377 = vsel %vm1350, %v1376, 0.0
      %v1378 = vadd.f32 %v1349, %v1377
      %vm1379 = vcmp.eq.s32.totalorder %v1204, 6
      %s1380 = scalar_lea.vmem [#allocation4], 6
      %v1381 = vld [vmem:[%s1380] ss:$8 sm:$0x3]
      %v1383 = vlaneseq
      %v1384 = vshrl.u32 %v1383, 7
      %v1385 = vsub.s32 0, %v1384
      %v1386 = vrot.slane %v1381, %v1385
      %v1387 = vlaneseq
      %v1388 = vshrl.u32 %v1387, 7
      %v1389 = vsub.s32 1, %v1388
      %v1390 = vrot.slane %v1381, %v1389
      %v1393 = vsel %vm1218, %v1386, 0.0
      %v1394 = vsel %vm1218, %v1390, 0.0
      %v1395 = vadd.f32 %v1393, %v1394
      %1396 = vadd.xlane.f32.xlu0 %v1395
      %v1397 = vpop.xlane.xlu0 %1396
      %v1398 = vrot.slane %v1397, 4
      %v1399 = vadd.f32 %v1397, %v1398
      %v1400 = vrot.slane %v1399, 2
      %v1401 = vadd.f32 %v1399, %v1400
      %v1402 = vrot.slane %v1401, 1
      %v1403 = vadd.f32 %v1401, %v1402
      %s1404 = vtos %v1403
      %v1405 = vstv %s1404
      %v1406 = vsel %vm1379, %v1405, 0.0
      %v1407 = vadd.f32 %v1378, %v1406
      %1408 = vst [vmem:[#allocation13] sm:$0x1] %v1407
    $region49: #{uresnet_ppn_loss.1} parent=1 // pred_fallthru
      _
    // Predicated region
    $region50: #{uresnet_ppn_loss.1} parent=1 // pred_check
      _
    $region51: #{uresnet_ppn_loss.1} parent=1 // pred_check_branch
      %1410 = sbr.rel (0) target = $region53
    $region52: #{uresnet_ppn_loss.1} parent=1 // pred_region
      %s1412 = ssub.s32 16, 16
      %1413 = vsyncadd [#allocation7], %s1412
      %s1415 = sshll.u32 [#allocation13], 4
      %s1416 = int_to_ptr.vmem [resolvable:$true] %s1415
      %1418 = dma.vmem_to_hbm [thread:$0]  %s1416, 16, %s4, [#allocation7]
    $region53: #{uresnet_ppn_loss.1} parent=1 // pred_fallthru
      _
    // Predicated region
    $region54: #{uresnet_ppn_loss.1} parent=1 // pred_check
      _
    $region55: #{uresnet_ppn_loss.1} parent=1 // pred_check_branch
      %1420 = sbr.rel (0) target = $region57
    $region56: #{uresnet_ppn_loss.1} parent=1 // pred_region
      %1421 = dma.done [#allocation7], 16
    $region57: #{uresnet_ppn_loss.1} parent=1 // pred_fallthru
      _
    %1422 = vsyncpa [#allocation6], 1
    %1423 = vsyncpa [#allocation9], 1
    %1424 = vsyncpa [#allocation12], 1
    %1425 = vsyncpa [#allocation7], 1

</llo_original>
